<compile_context>
chip_gen: v7x
topology: tpu7x:2x2x1
jax: 0.10.0
libtpu: 0.0.40
codegen_flags: <defaults>
</compile_context>

<pallas_src>
import jax
import jax.numpy as jnp
from jax.experimental import pallas as pl
from jax.experimental.pallas import tpu as pltpu


# ---------------------------------------------------------------------------
# Fused Pallas kernel: encoder stand-in + encode_task MLP + NormEMA VQ +
# decoder stand-in + both decode task MLPs + squared-error reductions.
# ---------------------------------------------------------------------------

def _vqnsp_fused_kernel(
    tok_ref, amp_ref, ang_ref,
    enc_w_ref, enc_b_ref,
    et_w1_ref, et_b1_ref, et_w2_ref, et_b2_ref,
    cb_ref, cbt_ref,
    dec_w_ref, dec_b_ref,
    dt_w1_ref, dt_b1_ref, dt_w2_ref, dt_b2_ref,
    da_w1_ref, da_b1_ref, da_w2_ref, da_b2_ref,
    idx_ref, emb_sq_ref, rec_sq_ref, ang_sq_ref,
):
    f32 = jnp.float32

    def mm(a, b):
        return jnp.dot(a, b, preferred_element_type=f32)

    # ---------------- encode: patch embed + encode_task_layer ----------------
    tok = tok_ref[...]                                        # [M, T]
    enc = mm(tok, enc_w_ref[...]) + enc_b_ref[...]            # [M, enc_dim]
    h = jnp.tanh(mm(enc, et_w1_ref[...]) + et_b1_ref[...])
    z = mm(h, et_w2_ref[...]) + et_b2_ref[...]                # [M, D]

    # ---------------- NormEMAVectorQuantizer hot path ----------------
    # F.normalize(z, dim=-1, eps=1e-12)  ==  z * rsqrt(max(sum(z^2), 1e-24))
    ss = jnp.sum(z * z, axis=-1, keepdims=True)               # [M, 1]
    zn = z * jax.lax.rsqrt(jnp.maximum(ss, 1e-24))            # [M, D]

    wt = cbt_ref[...]                                         # [D, K] (pre-transposed)
    cross = mm(zn, wt)                                        # [M, K] lane-dense
    ww = jnp.sum(wt * wt, axis=0, keepdims=True)              # [1, K]
    # ||z||^2 is a per-row constant -> dropped (cannot change the argmin).
    d = ww - 2.0 * cross                                      # [M, K]

    # argmin with first-occurrence tie-break (matches torch.argmin)
    K = d.shape[1]
    dmin = jnp.min(d, axis=-1, keepdims=True)
    col = jax.lax.broadcasted_iota(jnp.int32, d.shape, 1)
    idx = jnp.min(jnp.where(d == dmin, col, K), axis=-1)      # [M] int32

    # gather codebook rows via one-hot matmul (MXU)
    onehot = (col == idx[:, None]).astype(f32)                # [M, K]
    zq = mm(onehot, cb_ref[...])                              # [M, D]

    idx_ref[...] = idx[:, None]
    diff = zq - zn
    emb_sq_ref[...] = jnp.sum(diff * diff, keepdims=True)     # sum of sq err

    # straight-through estimator: forward value of z_q is z_q itself.

    # ---------------- decode: token embed + both task MLPs ----------------
    dec = mm(zq, dec_w_ref[...]) + dec_b_ref[...]             # [M, dec_dim]

    hr = jnp.tanh(mm(dec, dt_w1_ref[...]) + dt_b1_ref[...])
    rec = mm(hr, dt_w2_ref[...]) + dt_b2_ref[...]             # [M, out_dim]

    ha = jnp.tanh(mm(dec, da_w1_ref[...]) + da_b1_ref[...])
    rec_a = mm(ha, da_w2_ref[...]) + da_b2_ref[...]           # [M, out_dim]

    # ---------------- loss reductions (sums; mean taken outside) ------------
    dr = rec - amp_ref[...]
    rec_sq_ref[...] = jnp.sum(dr * dr, keepdims=True)
    dn = rec_a - ang_ref[...]
    ang_sq_ref[...] = jnp.sum(dn * dn, keepdims=True)


_VMEM = pl.BlockSpec(memory_space=pltpu.MemorySpace.VMEM)


def vqnsp_fused_call(tokens, target_amp, target_ang, p):
    """Single fused pallas_call for the whole VQNSP token path."""
    M = tokens.shape[0]
    inputs = (
        tokens, target_amp, target_ang,
        p["enc_w"], p["enc_b"],
        p["et_w1"], p["et_b1"], p["et_w2"], p["et_b2"],
        p["codebook"], p["codebook_t"],
        p["dec_w"], p["dec_b"],
        p["dt_w1"], p["dt_b1"], p["dt_w2"], p["dt_b2"],
        p["da_w1"], p["da_b1"], p["da_w2"], p["da_b2"],
    )
    out_shape = (
        jax.ShapeDtypeStruct((M, 1), jnp.int32),    # embed indices
        jax.ShapeDtypeStruct((1, 1), jnp.float32),  # sum sq (zq - zn)
        jax.ShapeDtypeStruct((1, 1), jnp.float32),  # sum sq (rec - amp)
        jax.ShapeDtypeStruct((1, 1), jnp.float32),  # sum sq (rec_angle - angle)
    )
    return pl.pallas_call(
        _vqnsp_fused_kernel,
        out_shape=out_shape,
        in_specs=[_VMEM] * len(inputs),
        out_specs=(_VMEM, _VMEM, _VMEM, _VMEM),
    )(*inputs)


# ---------------------------------------------------------------------------
# VQNSP model (deterministic synthetic parameters)
# ---------------------------------------------------------------------------

CFG = dict(
    B=2,            # batch
    N=4,            # EEG channels
    A=2,            # time patches per channel
    T=200,          # patch length (hard-coded by the reference forward)
    enc_dim=64,     # encoder embed dim
    dec_dim=48,     # decoder embed dim
    embed_dim=32,   # codebook / quantizer dim
    n_embed=512,    # codebook size
    out_dim=200,    # decoder_out_dim (must equal T for rec loss)
)


def l2norm(t):
    return t / jnp.maximum(
        jnp.sqrt(jnp.sum(t * t, axis=-1, keepdims=True)), 1e-12
    )


def init_params(key, cfg):
    ks = jax.random.split(key, 16)
    std = 0.02

    def nrm(k, shape):
        return std * jax.random.normal(k, shape, dtype=jnp.float32)

    def zeros_row(n):
        return jnp.zeros((1, n), jnp.float32)   # biases stored as [1, N]

    p = {}
    # encoder stand-in: linear patch embedding  (T -> enc_dim)
    p["enc_w"] = nrm(ks[0], (cfg["T"], cfg["enc_dim"]))
    p["enc_b"] = zeros_row(cfg["enc_dim"])
    # encode_task_layer: Linear(enc,enc) -> Tanh -> Linear(enc, embed_dim)
    p["et_w1"] = nrm(ks[1], (cfg["enc_dim"], cfg["enc_dim"]))
    p["et_b1"] = zeros_row(cfg["enc_dim"])
    p["et_w2"] = nrm(ks[2], (cfg["enc_dim"], cfg["embed_dim"]))
    p["et_b2"] = zeros_row(cfg["embed_dim"])
    # codebook (EmbeddingEMA, non-kmeans init: l2-normalized gaussian)
    cb = l2norm(
        jax.random.normal(ks[3], (cfg["n_embed"], cfg["embed_dim"]), jnp.float32)
    )
    p["codebook"] = cb                              # [K, D] for one-hot gather
    p["codebook_t"] = jnp.transpose(cb)             # [D, K] for lane-dense cross
    # decoder stand-in: linear token embedding  (embed_dim -> dec_dim)
    p["dec_w"] = nrm(ks[4], (cfg["embed_dim"], cfg["dec_dim"]))
    p["dec_b"] = zeros_row(cfg["dec_dim"])
    # decode_task_layer
    p["dt_w1"] = nrm(ks[5], (cfg["dec_dim"], cfg["dec_dim"]))
    p["dt_b1"] = zeros_row(cfg["dec_dim"])
    p["dt_w2"] = nrm(ks[6], (cfg["dec_dim"], cfg["out_dim"]))
    p["dt_b2"] = zeros_row(cfg["out_dim"])
    # decode_task_layer_angle
    p["da_w1"] = nrm(ks[7], (cfg["dec_dim"], cfg["dec_dim"]))
    p["da_b1"] = zeros_row(cfg["dec_dim"])
    p["da_w2"] = nrm(ks[8], (cfg["dec_dim"], cfg["out_dim"]))
    p["da_b2"] = zeros_row(cfg["out_dim"])
    return p


def std_norm(x):
    # torch.mean / torch.std(dim=(1,2,3), keepdim=True); torch.std is unbiased.
    mean = jnp.mean(x, axis=(1, 2, 3), keepdims=True)
    std = jnp.std(x, axis=(1, 2, 3), keepdims=True, ddof=1)
    return (x - mean) / std


def vqnsp_forward(params, x, cfg=CFG):
    """x: [B, N, A*T] float32  (PyTorch: x shape [B, N, T_total])."""
    B, N, Ttot = x.shape
    T = cfg["T"]
    A = Ttot // T
    M = B * N * A
    D = cfg["embed_dim"]
    out_dim = cfg["out_dim"]

    # rearrange 'B N (A T) -> B N A T'
    x4 = x.reshape(B, N, A, T).astype(jnp.float32)

    # spectral targets (FFT has no Pallas equivalent; plain JAX)
    x_fft = jnp.fft.fft(x4, axis=-1)
    amplitude = std_norm(jnp.abs(x_fft))
    angle = std_norm(jnp.angle(x_fft))

    # token order (b, n, a) == quantizer's 'b c h w -> b h w c' flatten with
    # h = N, w = A, and the loss target's 'b n a c -> b (n a) c' flatten.
    tokens = x4.reshape(M, T)
    target_amp = amplitude.reshape(M, T)
    target_ang = angle.reshape(M, T)

    idx, emb_sq, rec_sq, ang_sq = vqnsp_fused_call(
        tokens, target_amp, target_ang, params
    )

    beta = 1.0
    emb_loss = beta * emb_sq[0, 0] / (M * D)          # F.mse_loss (mean)
    rec_loss = rec_sq[0, 0] / (M * out_dim)
    rec_angle_loss = ang_sq[0, 0] / (M * out_dim)
    loss = emb_loss + rec_loss + rec_angle_loss

    log = {
        "train/quant_loss": emb_loss,
        "train/rec_loss": rec_loss,
        "train/rec_angle_loss": rec_angle_loss,
        "train/total_loss": loss,
    }
    return loss, log, idx[:, 0]


# ---------------------------------------------------------------------------

if __name__ == "__main__":
    key = jax.random.PRNGKey(0)
    pkey, xkey = jax.random.split(key)
    params = init_params(pkey, CFG)

    B, N, A, T = CFG["B"], CFG["N"], CFG["A"], CFG["T"]
    x = jax.random.normal(xkey, (B, N, A * T), dtype=jnp.float32)

    fwd = jax.jit(vqnsp_forward)
    loss, log, embed_ind = fwd(params, x)
    jax.block_until_ready(loss)
    jax.block_until_ready(embed_ind)

    assert loss.shape == ()
    assert embed_ind.shape == (B * N * A,)
    assert jnp.isfinite(loss)
    assert jnp.all(embed_ind >= 0) and jnp.all(embed_ind < CFG["n_embed"])
    print("KERNEL_OK")
</pallas_src>

<mosaic_0001>
module attributes {stable_mosaic.version = 11 : i64} {
  func.func @_vqnsp_fused_kernel(%arg0: memref<16x200xf32, #tpu.memory_space<vmem>>, %arg1: memref<16x200xf32, #tpu.memory_space<vmem>>, %arg2: memref<16x200xf32, #tpu.memory_space<vmem>>, %arg3: memref<200x64xf32, #tpu.memory_space<vmem>>, %arg4: memref<1x64xf32, #tpu.memory_space<vmem>>, %arg5: memref<64x64xf32, #tpu.memory_space<vmem>>, %arg6: memref<1x64xf32, #tpu.memory_space<vmem>>, %arg7: memref<64x32xf32, #tpu.memory_space<vmem>>, %arg8: memref<1x32xf32, #tpu.memory_space<vmem>>, %arg9: memref<512x32xf32, #tpu.memory_space<vmem>>, %arg10: memref<32x512xf32, #tpu.memory_space<vmem>>, %arg11: memref<32x48xf32, #tpu.memory_space<vmem>>, %arg12: memref<1x48xf32, #tpu.memory_space<vmem>>, %arg13: memref<48x48xf32, #tpu.memory_space<vmem>>, %arg14: memref<1x48xf32, #tpu.memory_space<vmem>>, %arg15: memref<48x200xf32, #tpu.memory_space<vmem>>, %arg16: memref<1x200xf32, #tpu.memory_space<vmem>>, %arg17: memref<48x48xf32, #tpu.memory_space<vmem>>, %arg18: memref<1x48xf32, #tpu.memory_space<vmem>>, %arg19: memref<48x200xf32, #tpu.memory_space<vmem>>, %arg20: memref<1x200xf32, #tpu.memory_space<vmem>>, %arg21: memref<16x1xi32, #tpu.memory_space<vmem>>, %arg22: memref<1x1xf32, #tpu.memory_space<vmem>>, %arg23: memref<1x1xf32, #tpu.memory_space<vmem>>, %arg24: memref<1x1xf32, #tpu.memory_space<vmem>>) attributes {dimension_semantics = [], scalar_prefetch = 0 : i64, scratch_operands = 0 : i64, tpu.core_type = #tpu.core_type<tc>} {
    %c0 = arith.constant 0 : index
    %c0_0 = arith.constant 0 : index
    %0 = vector.load %arg0[%c0, %c0_0] : memref<16x200xf32, #tpu.memory_space<vmem>>, vector<16x200xf32>
    %c0_1 = arith.constant 0 : index
    %c0_2 = arith.constant 0 : index
    %1 = vector.load %arg3[%c0_1, %c0_2] : memref<200x64xf32, #tpu.memory_space<vmem>>, vector<200x64xf32>
    %cst = arith.constant dense<0.000000e+00> : vector<16x64xf32>
    %2 = tpu.matmul %0, %1, %cst {dimension_numbers = #tpu.dot_dimension_numbers<[1], [0], [0], [1], [0, 0, 1, 1], [], []>} : vector<16x200xf32>, vector<200x64xf32>, vector<16x64xf32> -> vector<16x64xf32>
    %c0_3 = arith.constant 0 : index
    %c0_4 = arith.constant 0 : index
    %3 = vector.load %arg4[%c0_3, %c0_4] : memref<1x64xf32, #tpu.memory_space<vmem>>, vector<1x64xf32>
    %4 = vector.broadcast %3 : vector<1x64xf32> to vector<16x64xf32>
    %5 = arith.addf %2, %4 : vector<16x64xf32>
    %c0_5 = arith.constant 0 : index
    %c0_6 = arith.constant 0 : index
    %6 = vector.load %arg5[%c0_5, %c0_6] : memref<64x64xf32, #tpu.memory_space<vmem>>, vector<64x64xf32>
    %cst_7 = arith.constant dense<0.000000e+00> : vector<16x64xf32>
    %7 = tpu.matmul %5, %6, %cst_7 {dimension_numbers = #tpu.dot_dimension_numbers<[1], [0], [0], [1], [0, 0, 1, 1], [], []>} : vector<16x64xf32>, vector<64x64xf32>, vector<16x64xf32> -> vector<16x64xf32>
    %c0_8 = arith.constant 0 : index
    %c0_9 = arith.constant 0 : index
    %8 = vector.load %arg6[%c0_8, %c0_9] : memref<1x64xf32, #tpu.memory_space<vmem>>, vector<1x64xf32>
    %9 = vector.broadcast %8 : vector<1x64xf32> to vector<16x64xf32>
    %10 = arith.addf %7, %9 : vector<16x64xf32>
    %11 = math.tanh %10 : vector<16x64xf32>
    %c0_10 = arith.constant 0 : index
    %c0_11 = arith.constant 0 : index
    %12 = vector.load %arg7[%c0_10, %c0_11] : memref<64x32xf32, #tpu.memory_space<vmem>>, vector<64x32xf32>
    %cst_12 = arith.constant dense<0.000000e+00> : vector<16x32xf32>
    %13 = tpu.matmul %11, %12, %cst_12 {dimension_numbers = #tpu.dot_dimension_numbers<[1], [0], [0], [1], [0, 0, 1, 1], [], []>} : vector<16x64xf32>, vector<64x32xf32>, vector<16x32xf32> -> vector<16x32xf32>
    %c0_13 = arith.constant 0 : index
    %c0_14 = arith.constant 0 : index
    %14 = vector.load %arg8[%c0_13, %c0_14] : memref<1x32xf32, #tpu.memory_space<vmem>>, vector<1x32xf32>
    %15 = vector.broadcast %14 : vector<1x32xf32> to vector<16x32xf32>
    %16 = arith.addf %13, %15 : vector<16x32xf32>
    %17 = arith.mulf %16, %16 : vector<16x32xf32>
    %cst_15 = arith.constant dense<0.000000e+00> : vector<16xf32>
    %18 = vector.multi_reduction <add>, %17, %cst_15 [1] : vector<16x32xf32> to vector<16xf32>
    %19 = vector.shape_cast %18 : vector<16xf32> to vector<16x1xf32>
    %cst_16 = arith.constant 1.000000e-24 : f32
    %20 = vector.broadcast %cst_16 : f32 to vector<16x1xf32>
    %21 = arith.maximumf %19, %20 : vector<16x1xf32>
    %22 = math.rsqrt %21 : vector<16x1xf32>
    %23 = vector.broadcast %22 : vector<16x1xf32> to vector<16x32xf32>
    %24 = arith.mulf %16, %23 : vector<16x32xf32>
    %c0_17 = arith.constant 0 : index
    %c0_18 = arith.constant 0 : index
    %25 = vector.load %arg10[%c0_17, %c0_18] : memref<32x512xf32, #tpu.memory_space<vmem>>, vector<32x512xf32>
    %cst_19 = arith.constant dense<0.000000e+00> : vector<16x512xf32>
    %26 = tpu.matmul %24, %25, %cst_19 {dimension_numbers = #tpu.dot_dimension_numbers<[1], [0], [0], [1], [0, 0, 1, 1], [], []>} : vector<16x32xf32>, vector<32x512xf32>, vector<16x512xf32> -> vector<16x512xf32>
    %27 = arith.mulf %25, %25 : vector<32x512xf32>
    %cst_20 = arith.constant dense<0.000000e+00> : vector<512xf32>
    %28 = vector.multi_reduction <add>, %27, %cst_20 [0] : vector<32x512xf32> to vector<512xf32>
    %29 = vector.shape_cast %28 : vector<512xf32> to vector<1x512xf32>
    %cst_21 = arith.constant 2.000000e+00 : f32
    %30 = vector.broadcast %cst_21 : f32 to vector<16x512xf32>
    %31 = arith.mulf %30, %26 : vector<16x512xf32>
    %32 = vector.broadcast %29 : vector<1x512xf32> to vector<16x512xf32>
    %33 = arith.subf %32, %31 : vector<16x512xf32>
    %cst_22 = arith.constant dense<0x7F800000> : vector<16xf32>
    %34 = vector.multi_reduction <minimumf>, %33, %cst_22 [1] : vector<16x512xf32> to vector<16xf32>
    %35 = vector.shape_cast %34 : vector<16xf32> to vector<16x1xf32>
    %36 = tpu.iota {dimensions = array<i32: 1>} : vector<16x512xi32>
    %37 = vector.broadcast %35 : vector<16x1xf32> to vector<16x512xf32>
    %38 = arith.cmpf oeq, %33, %37 : vector<16x512xf32>
    %c512_i32 = arith.constant 512 : i32
    %39 = vector.broadcast %c512_i32 : i32 to vector<16x512xi32>
    %40 = arith.select %38, %36, %39 : vector<16x512xi1>, vector<16x512xi32>
    %cst_23 = arith.constant dense<2147483647> : vector<16xi32>
    %41 = vector.multi_reduction <minsi>, %40, %cst_23 [1] : vector<16x512xi32> to vector<16xi32>
    %42 = vector.shape_cast %41 : vector<16xi32> to vector<16x1xi32>
    %43 = vector.broadcast %42 : vector<16x1xi32> to vector<16x512xi32>
    %44 = arith.cmpi eq, %36, %43 : vector<16x512xi32>
    %45 = arith.extui %44 : vector<16x512xi1> to vector<16x512xi32>
    %46 = arith.sitofp %45 : vector<16x512xi32> to vector<16x512xf32>
    %c0_24 = arith.constant 0 : index
    %c0_25 = arith.constant 0 : index
    %47 = vector.load %arg9[%c0_24, %c0_25] : memref<512x32xf32, #tpu.memory_space<vmem>>, vector<512x32xf32>
    %cst_26 = arith.constant dense<0.000000e+00> : vector<16x32xf32>
    %48 = tpu.matmul %46, %47, %cst_26 {dimension_numbers = #tpu.dot_dimension_numbers<[1], [0], [0], [1], [0, 0, 1, 1], [], []>} : vector<16x512xf32>, vector<512x32xf32>, vector<16x32xf32> -> vector<16x32xf32>
    %49 = vector.shape_cast %41 : vector<16xi32> to vector<16x1xi32>
    %c0_27 = arith.constant 0 : index
    %c0_28 = arith.constant 0 : index
    %50 = vector.load %arg21[%c0_27, %c0_28] : memref<16x1xi32, #tpu.memory_space<vmem>>, vector<16x1xi32>
    tpu.vector_store %arg21[%c0_27, %c0_28], %49 {strides = array<i32>} : memref<16x1xi32, #tpu.memory_space<vmem>>, vector<16x1xi32>,
    %51 = arith.subf %48, %24 : vector<16x32xf32>
    %52 = arith.mulf %51, %51 : vector<16x32xf32>
    %53 = vector.shape_cast %52 : vector<16x32xf32> to vector<1x16x32xf32>
    %cst_29 = arith.constant dense<0.000000e+00> : vector<1xf32>
    %54 = vector.multi_reduction <add>, %53, %cst_29 [1, 2] : vector<1x16x32xf32> to vector<1xf32>
    %55 = vector.shape_cast %54 : vector<1xf32> to vector<1x1x1xf32>
    %56 = vector.extract %55[0, 0, 0] : f32 from vector<1x1x1xf32>
    %57 = vector.broadcast %56 : f32 to vector<1x1xf32>
    %c0_30 = arith.constant 0 : index
    %c0_31 = arith.constant 0 : index
    %58 = vector.load %arg22[%c0_30, %c0_31] : memref<1x1xf32, #tpu.memory_space<vmem>>, vector<1x1xf32>
    tpu.vector_store %arg22[%c0_30, %c0_31], %57 {strides = array<i32>} : memref<1x1xf32, #tpu.memory_space<vmem>>, vector<1x1xf32>,
    %c0_32 = arith.constant 0 : index
    %c0_33 = arith.constant 0 : index
    %59 = vector.load %arg11[%c0_32, %c0_33] : memref<32x48xf32, #tpu.memory_space<vmem>>, vector<32x48xf32>
    %cst_34 = arith.constant dense<0.000000e+00> : vector<16x48xf32>
    %60 = tpu.matmul %48, %59, %cst_34 {dimension_numbers = #tpu.dot_dimension_numbers<[1], [0], [0], [1], [0, 0, 1, 1], [], []>} : vector<16x32xf32>, vector<32x48xf32>, vector<16x48xf32> -> vector<16x48xf32>
    %c0_35 = arith.constant 0 : index
    %c0_36 = arith.constant 0 : index
    %61 = vector.load %arg12[%c0_35, %c0_36] : memref<1x48xf32, #tpu.memory_space<vmem>>, vector<1x48xf32>
    %62 = vector.broadcast %61 : vector<1x48xf32> to vector<16x48xf32>
    %63 = arith.addf %60, %62 : vector<16x48xf32>
    %c0_37 = arith.constant 0 : index
    %c0_38 = arith.constant 0 : index
    %64 = vector.load %arg13[%c0_37, %c0_38] : memref<48x48xf32, #tpu.memory_space<vmem>>, vector<48x48xf32>
    %cst_39 = arith.constant dense<0.000000e+00> : vector<16x48xf32>
    %65 = tpu.matmul %63, %64, %cst_39 {dimension_numbers = #tpu.dot_dimension_numbers<[1], [0], [0], [1], [0, 0, 1, 1], [], []>} : vector<16x48xf32>, vector<48x48xf32>, vector<16x48xf32> -> vector<16x48xf32>
    %c0_40 = arith.constant 0 : index
    %c0_41 = arith.constant 0 : index
    %66 = vector.load %arg14[%c0_40, %c0_41] : memref<1x48xf32, #tpu.memory_space<vmem>>, vector<1x48xf32>
    %67 = vector.broadcast %66 : vector<1x48xf32> to vector<16x48xf32>
    %68 = arith.addf %65, %67 : vector<16x48xf32>
    %69 = math.tanh %68 : vector<16x48xf32>
    %c0_42 = arith.constant 0 : index
    %c0_43 = arith.constant 0 : index
    %70 = vector.load %arg15[%c0_42, %c0_43] : memref<48x200xf32, #tpu.memory_space<vmem>>, vector<48x200xf32>
    %cst_44 = arith.constant dense<0.000000e+00> : vector<16x200xf32>
    %71 = tpu.matmul %69, %70, %cst_44 {dimension_numbers = #tpu.dot_dimension_numbers<[1], [0], [0], [1], [0, 0, 1, 1], [], []>} : vector<16x48xf32>, vector<48x200xf32>, vector<16x200xf32> -> vector<16x200xf32>
    %c0_45 = arith.constant 0 : index
    %c0_46 = arith.constant 0 : index
    %72 = vector.load %arg16[%c0_45, %c0_46] : memref<1x200xf32, #tpu.memory_space<vmem>>, vector<1x200xf32>
    %73 = vector.broadcast %72 : vector<1x200xf32> to vector<16x200xf32>
    %74 = arith.addf %71, %73 : vector<16x200xf32>
    %c0_47 = arith.constant 0 : index
    %c0_48 = arith.constant 0 : index
    %75 = vector.load %arg17[%c0_47, %c0_48] : memref<48x48xf32, #tpu.memory_space<vmem>>, vector<48x48xf32>
    %cst_49 = arith.constant dense<0.000000e+00> : vector<16x48xf32>
    %76 = tpu.matmul %63, %75, %cst_49 {dimension_numbers = #tpu.dot_dimension_numbers<[1], [0], [0], [1], [0, 0, 1, 1], [], []>} : vector<16x48xf32>, vector<48x48xf32>, vector<16x48xf32> -> vector<16x48xf32>
    %c0_50 = arith.constant 0 : index
    %c0_51 = arith.constant 0 : index
    %77 = vector.load %arg18[%c0_50, %c0_51] : memref<1x48xf32, #tpu.memory_space<vmem>>, vector<1x48xf32>
    %78 = vector.broadcast %77 : vector<1x48xf32> to vector<16x48xf32>
    %79 = arith.addf %76, %78 : vector<16x48xf32>
    %80 = math.tanh %79 : vector<16x48xf32>
    %c0_52 = arith.constant 0 : index
    %c0_53 = arith.constant 0 : index
    %81 = vector.load %arg19[%c0_52, %c0_53] : memref<48x200xf32, #tpu.memory_space<vmem>>, vector<48x200xf32>
    %cst_54 = arith.constant dense<0.000000e+00> : vector<16x200xf32>
    %82 = tpu.matmul %80, %81, %cst_54 {dimension_numbers = #tpu.dot_dimension_numbers<[1], [0], [0], [1], [0, 0, 1, 1], [], []>} : vector<16x48xf32>, vector<48x200xf32>, vector<16x200xf32> -> vector<16x200xf32>
    %c0_55 = arith.constant 0 : index
    %c0_56 = arith.constant 0 : index
    %83 = vector.load %arg20[%c0_55, %c0_56] : memref<1x200xf32, #tpu.memory_space<vmem>>, vector<1x200xf32>
    %84 = vector.broadcast %83 : vector<1x200xf32> to vector<16x200xf32>
    %85 = arith.addf %82, %84 : vector<16x200xf32>
    %c0_57 = arith.constant 0 : index
    %c0_58 = arith.constant 0 : index
    %86 = vector.load %arg1[%c0_57, %c0_58] : memref<16x200xf32, #tpu.memory_space<vmem>>, vector<16x200xf32>
    %87 = arith.subf %74, %86 : vector<16x200xf32>
    %88 = arith.mulf %87, %87 : vector<16x200xf32>
    %89 = vector.shape_cast %88 : vector<16x200xf32> to vector<1x16x200xf32>
    %cst_59 = arith.constant dense<0.000000e+00> : vector<1xf32>
    %90 = vector.multi_reduction <add>, %89, %cst_59 [1, 2] : vector<1x16x200xf32> to vector<1xf32>
    %91 = vector.shape_cast %90 : vector<1xf32> to vector<1x1x1xf32>
    %92 = vector.extract %91[0, 0, 0] : f32 from vector<1x1x1xf32>
    %93 = vector.broadcast %92 : f32 to vector<1x1xf32>
    %c0_60 = arith.constant 0 : index
    %c0_61 = arith.constant 0 : index
    %94 = vector.load %arg23[%c0_60, %c0_61] : memref<1x1xf32, #tpu.memory_space<vmem>>, vector<1x1xf32>
    tpu.vector_store %arg23[%c0_60, %c0_61], %93 {strides = array<i32>} : memref<1x1xf32, #tpu.memory_space<vmem>>, vector<1x1xf32>,
    %c0_62 = arith.constant 0 : index
    %c0_63 = arith.constant 0 : index
    %95 = vector.load %arg2[%c0_62, %c0_63] : memref<16x200xf32, #tpu.memory_space<vmem>>, vector<16x200xf32>
    %96 = arith.subf %85, %95 : vector<16x200xf32>
    %97 = arith.mulf %96, %96 : vector<16x200xf32>
    %98 = vector.shape_cast %97 : vector<16x200xf32> to vector<1x16x200xf32>
    %cst_64 = arith.constant dense<0.000000e+00> : vector<1xf32>
    %99 = vector.multi_reduction <add>, %98, %cst_64 [1, 2] : vector<1x16x200xf32> to vector<1xf32>
    %100 = vector.shape_cast %99 : vector<1xf32> to vector<1x1x1xf32>
    %101 = vector.extract %100[0, 0, 0] : f32 from vector<1x1x1xf32>
    %102 = vector.broadcast %101 : f32 to vector<1x1xf32>
    %c0_65 = arith.constant 0 : index
    %c0_66 = arith.constant 0 : index
    %103 = vector.load %arg24[%c0_65, %c0_66] : memref<1x1xf32, #tpu.memory_space<vmem>>, vector<1x1xf32>
    tpu.vector_store %arg24[%c0_65, %c0_66], %102 {strides = array<i32>} : memref<1x1xf32, #tpu.memory_space<vmem>>, vector<1x1xf32>,
    return
  }
}

</mosaic_0001>

<llo_original>
// kernel: vqnsp_forward.1
$region0: #{vqnsp_forward.1}
  #allocation0 [shape = 'u32[]', space=smem, size = 0x4, offset = 0x4, fixed_abs, tag = 'smem constant byte address 0x4 - core index']
  #allocation1 [shape = 'u32[144,128]{1,0:T(1,128)}', space=vmem, size = 0x12000, scoped, tag = 'internal scratch']
  %s0 = inlined_call_operand.vmem [shape: f32[16,200], index: 0, kind: input, shape index: {}]
  %s1 = inlined_call_operand.vmem [shape: f32[16,200], index: 1, kind: input, shape index: {}]
  %s2 = inlined_call_operand.vmem [shape: f32[16,200], index: 2, kind: input, shape index: {}]
  %s3 = inlined_call_operand.vmem [shape: f32[200,64], index: 3, kind: input, shape index: {}]
  %s4 = inlined_call_operand.vmem [shape: f32[1,64], index: 4, kind: input, shape index: {}]
  %s5 = inlined_call_operand.vmem [shape: f32[64,64], index: 5, kind: input, shape index: {}]
  %s6 = inlined_call_operand.vmem [shape: f32[1,64], index: 6, kind: input, shape index: {}]
  %s7 = inlined_call_operand.vmem [shape: f32[64,32], index: 7, kind: input, shape index: {}]
  %s8 = inlined_call_operand.vmem [shape: f32[1,32], index: 8, kind: input, shape index: {}]
  %s9 = inlined_call_operand.vmem [shape: f32[512,32], index: 9, kind: input, shape index: {}]
  %s10 = inlined_call_operand.vmem [shape: f32[32,512], index: 10, kind: input, shape index: {}]
  %s11 = inlined_call_operand.vmem [shape: f32[32,48], index: 11, kind: input, shape index: {}]
  %s12 = inlined_call_operand.vmem [shape: f32[1,48], index: 12, kind: input, shape index: {}]
  %s13 = inlined_call_operand.vmem [shape: f32[48,48], index: 13, kind: input, shape index: {}]
  %s14 = inlined_call_operand.vmem [shape: f32[1,48], index: 14, kind: input, shape index: {}]
  %s15 = inlined_call_operand.vmem [shape: f32[48,200], index: 15, kind: input, shape index: {}]
  %s16 = inlined_call_operand.vmem [shape: f32[1,200], index: 16, kind: input, shape index: {}]
  %s17 = inlined_call_operand.vmem [shape: f32[48,48], index: 17, kind: input, shape index: {}]
  %s18 = inlined_call_operand.vmem [shape: f32[1,48], index: 18, kind: input, shape index: {}]
  %s19 = inlined_call_operand.vmem [shape: f32[48,200], index: 19, kind: input, shape index: {}]
  %s20 = inlined_call_operand.vmem [shape: f32[1,200], index: 20, kind: input, shape index: {}]
  %s21 = inlined_call_operand.vmem [shape: s32[16,1], index: 21, kind: output, shape index: {0}]
  %s22 = inlined_call_operand.hbm [shape: f32[1,1], index: 22, kind: output, shape index: {1}]
  %s23 = inlined_call_operand.hbm [shape: f32[1,1], index: 23, kind: output, shape index: {2}]
  %s24 = inlined_call_operand.hbm [shape: f32[1,1], index: 24, kind: output, shape index: {3}]
  %25 = xla_tuple %s21, %s22, %s23, %s24
  %s26 = sld [smem:[#allocation0]]
  $region118: #{vqnsp_forward.1} parent=0
    _
  %s28 = ssub.s32 1, %s26
  %s29 = scalar_select 0, %s28, %s26
  $region1: #{vqnsp_forward.1} parent=0
    #allocation2 [shape = 'u8[512]{0}', space=vmem, size = 0x400, scoped, tag = 'output window, operand 1, single buffered']
    #allocation3 [shape = 's32[1]{0}', space=sflag, size = 0x4, scoped, tag = 'scoped memory for vqnsp_forward.1']
    #allocation4 [shape = 'u8[512]{0}', space=vmem, size = 0x400, scoped, tag = 'output window, operand 2, single buffered']
    #allocation5 [shape = 's32[1]{0}', space=sflag, size = 0x4, scoped, tag = 'scoped memory for vqnsp_forward.1']
    #allocation6 [shape = 'u8[512]{0}', space=vmem, size = 0x400, scoped, tag = 'output window, operand 3, single buffered']
    %30 = vsyncpa [#allocation3], 0
    %31 = vsyncpa [#allocation5], 0
    // Predicated region
    $region2: #{vqnsp_forward.1} parent=1 // pred_check
      _
    $region3: #{vqnsp_forward.1} parent=1 // pred_check_branch
      %33 = sbr.rel (0) target = $region5
    $region4: #{vqnsp_forward.1} parent=1 // pred_region
      _
    $region5: #{vqnsp_forward.1} parent=1 // pred_fallthru
      _
    // Predicated region
    $region6: #{vqnsp_forward.1} parent=1 // pred_check
      _
    $region7: #{vqnsp_forward.1} parent=1 // pred_check_branch
      %35 = sbr.rel (0) target = $region9
    $region8: #{vqnsp_forward.1} parent=1 // pred_region
      _
    $region9: #{vqnsp_forward.1} parent=1 // pred_fallthru
      _
    // Predicated region
    $region10: #{vqnsp_forward.1} parent=1 // pred_check
      _
    $region11: #{vqnsp_forward.1} parent=1 // pred_check_branch
      %37 = sbr.rel (0) target = $region13
    $region12: #{vqnsp_forward.1} parent=1 // pred_region
      _
    $region13: #{vqnsp_forward.1} parent=1 // pred_fallthru
      _
    // Predicated region
    $region14: #{vqnsp_forward.1} parent=1 // pred_check
      _
    $region15: #{vqnsp_forward.1} parent=1 // pred_check_branch
      %39 = sbr.rel (0) target = $region17
    $region16: #{vqnsp_forward.1} parent=1 // pred_region
      _
    $region17: #{vqnsp_forward.1} parent=1 // pred_fallthru
      _
    // Predicated region
    $region18: #{vqnsp_forward.1} parent=1 // pred_check
      _
    $region19: #{vqnsp_forward.1} parent=1 // pred_check_branch
      %41 = sbr.rel (0) target = $region21
    $region20: #{vqnsp_forward.1} parent=1 // pred_region
      _
    $region21: #{vqnsp_forward.1} parent=1 // pred_fallthru
      _
    // Predicated region
    $region22: #{vqnsp_forward.1} parent=1 // pred_check
      _
    $region23: #{vqnsp_forward.1} parent=1 // pred_check_branch
      %43 = sbr.rel (0) target = $region25
    $region24: #{vqnsp_forward.1} parent=1 // pred_region
      _
    $region25: #{vqnsp_forward.1} parent=1 // pred_fallthru
      _
    // Predicated region
    $region26: #{vqnsp_forward.1} parent=1 // pred_check
      _
    $region27: #{vqnsp_forward.1} parent=1 // pred_check_branch
      %45 = sbr.rel (0) target = $region29
    $region28: #{vqnsp_forward.1} parent=1 // pred_region
      _
    $region29: #{vqnsp_forward.1} parent=1 // pred_fallthru
      _
    // Predicated region
    $region30: #{vqnsp_forward.1} parent=1 // pred_check
      _
    $region31: #{vqnsp_forward.1} parent=1 // pred_check_branch
      %47 = sbr.rel (0) target = $region33
    $region32: #{vqnsp_forward.1} parent=1 // pred_region
      _
    $region33: #{vqnsp_forward.1} parent=1 // pred_fallthru
      _
    // Predicated region
    $region34: #{vqnsp_forward.1} parent=1 // pred_check
      _
    $region35: #{vqnsp_forward.1} parent=1 // pred_check_branch
      %49 = sbr.rel (0) target = $region37
    $region36: #{vqnsp_forward.1} parent=1 // pred_region
      _
    $region37: #{vqnsp_forward.1} parent=1 // pred_fallthru
      _
    // Predicated region
    $region38: #{vqnsp_forward.1} parent=1 // pred_check
      _
    $region39: #{vqnsp_forward.1} parent=1 // pred_check_branch
      %51 = sbr.rel (0) target = $region41
    $region40: #{vqnsp_forward.1} parent=1 // pred_region
      _
    $region41: #{vqnsp_forward.1} parent=1 // pred_fallthru
      _
    // Predicated region
    $region42: #{vqnsp_forward.1} parent=1 // pred_check
      _
    $region43: #{vqnsp_forward.1} parent=1 // pred_check_branch
      %53 = sbr.rel (0) target = $region45
    $region44: #{vqnsp_forward.1} parent=1 // pred_region
      _
    $region45: #{vqnsp_forward.1} parent=1 // pred_fallthru
      _
    // Predicated region
    $region46: #{vqnsp_forward.1} parent=1 // pred_check
      _
    $region47: #{vqnsp_forward.1} parent=1 // pred_check_branch
      %55 = sbr.rel (0) target = $region49
    $region48: #{vqnsp_forward.1} parent=1 // pred_region
      _
    $region49: #{vqnsp_forward.1} parent=1 // pred_fallthru
      _
    // Predicated region
    $region50: #{vqnsp_forward.1} parent=1 // pred_check
      _
    $region51: #{vqnsp_forward.1} parent=1 // pred_check_branch
      %57 = sbr.rel (0) target = $region53
    $region52: #{vqnsp_forward.1} parent=1 // pred_region
      _
    $region53: #{vqnsp_forward.1} parent=1 // pred_fallthru
      _
    // Predicated region
    $region54: #{vqnsp_forward.1} parent=1 // pred_check
      _
    $region55: #{vqnsp_forward.1} parent=1 // pred_check_branch
      %59 = sbr.rel (0) target = $region57
    $region56: #{vqnsp_forward.1} parent=1 // pred_region
      _
    $region57: #{vqnsp_forward.1} parent=1 // pred_fallthru
      _
    // Predicated region
    $region58: #{vqnsp_forward.1} parent=1 // pred_check
      _
    $region59: #{vqnsp_forward.1} parent=1 // pred_check_branch
      %61 = sbr.rel (0) target = $region61
    $region60: #{vqnsp_forward.1} parent=1 // pred_region
      _
    $region61: #{vqnsp_forward.1} parent=1 // pred_fallthru
      _
    // Predicated region
    $region62: #{vqnsp_forward.1} parent=1 // pred_check
      _
    $region63: #{vqnsp_forward.1} parent=1 // pred_check_branch
      %63 = sbr.rel (0) target = $region65
    $region64: #{vqnsp_forward.1} parent=1 // pred_region
      _
    $region65: #{vqnsp_forward.1} parent=1 // pred_fallthru
      _
    // Predicated region
    $region66: #{vqnsp_forward.1} parent=1 // pred_check
      _
    $region67: #{vqnsp_forward.1} parent=1 // pred_check_branch
      %65 = sbr.rel (0) target = $region69
    $region68: #{vqnsp_forward.1} parent=1 // pred_region
      _
    $region69: #{vqnsp_forward.1} parent=1 // pred_fallthru
      _
    // Predicated region
    $region70: #{vqnsp_forward.1} parent=1 // pred_check
      _
    $region71: #{vqnsp_forward.1} parent=1 // pred_check_branch
      %67 = sbr.rel (0) target = $region73
    $region72: #{vqnsp_forward.1} parent=1 // pred_region
      _
    $region73: #{vqnsp_forward.1} parent=1 // pred_fallthru
      _
    // Predicated region
    $region74: #{vqnsp_forward.1} parent=1 // pred_check
      _
    $region75: #{vqnsp_forward.1} parent=1 // pred_check_branch
      %69 = sbr.rel (0) target = $region77
    $region76: #{vqnsp_forward.1} parent=1 // pred_region
      _
    $region77: #{vqnsp_forward.1} parent=1 // pred_fallthru
      _
    // Predicated region
    $region78: #{vqnsp_forward.1} parent=1 // pred_check
      _
    $region79: #{vqnsp_forward.1} parent=1 // pred_check_branch
      %71 = sbr.rel (0) target = $region81
    $region80: #{vqnsp_forward.1} parent=1 // pred_region
      _
    $region81: #{vqnsp_forward.1} parent=1 // pred_fallthru
      _
    // Predicated region
    $region82: #{vqnsp_forward.1} parent=1 // pred_check
      _
    $region83: #{vqnsp_forward.1} parent=1 // pred_check_branch
      %73 = sbr.rel (0) target = $region85
    $region84: #{vqnsp_forward.1} parent=1 // pred_region
      _
    $region85: #{vqnsp_forward.1} parent=1 // pred_fallthru
      _
    %v74 = vld [vmem:[%s0] sm:$0xff]
    %v75 = vld [vmem:[%s0 + $0x8] sm:$0xff]
    %v76 = vld [vmem:[%s0 + $0x10] sm:$0xff]
    %v77 = vld [vmem:[%s0 + $0x18] sm:$0xff]
    %v78 = vld [vmem:[%s3] sm:$0xff]
    %v79 = vld [vmem:[%s3 + $0x8] sm:$0xff]
    %v80 = vld [vmem:[%s3 + $0x10] sm:$0xff]
    %v81 = vld [vmem:[%s3 + $0x18] sm:$0xff]
    %v82 = vld [vmem:[%s3 + $0x20] sm:$0xff]
    %v83 = vld [vmem:[%s3 + $0x28] sm:$0xff]
    %v84 = vld [vmem:[%s3 + $0x30] sm:$0xff]
    %v85 = vld [vmem:[%s3 + $0x38] sm:$0xff]
    %v86 = vld [vmem:[%s3 + $0x40] sm:$0xff]
    %v87 = vld [vmem:[%s3 + $0x48] sm:$0xff]
    %v88 = vld [vmem:[%s3 + $0x50] sm:$0xff]
    %v89 = vld [vmem:[%s3 + $0x58] sm:$0xff]
    %v90 = vld [vmem:[%s3 + $0x60] sm:$0xff]
    %v91 = vld [vmem:[%s3 + $0x68] sm:$0xff]
    %v92 = vld [vmem:[%s3 + $0x70] sm:$0xff]
    %v93 = vld [vmem:[%s3 + $0x78] sm:$0xff]
    %v94 = vld [vmem:[%s3 + $0x80] sm:$0xff]
    %v95 = vld [vmem:[%s3 + $0x88] sm:$0xff]
    %v96 = vld [vmem:[%s3 + $0x90] sm:$0xff]
    %v97 = vld [vmem:[%s3 + $0x98] sm:$0xff]
    %v98 = vld [vmem:[%s3 + $0xa0] sm:$0xff]
    %v99 = vld [vmem:[%s3 + $0xa8] sm:$0xff]
    %v100 = vld [vmem:[%s3 + $0xb0] sm:$0xff]
    %v101 = vld [vmem:[%s3 + $0xb8] sm:$0xff]
    %v102 = vld [vmem:[%s3 + $0xc0] sm:$0xff]
    %v103 = vld [vmem:[%s4] sm:$0x1]
    %v105 = vlaneseq
    %v106 = vshrl.u32 %v105, 7
    %v107 = vsub.s32 0, %v106
    %v108 = vrot.slane %v103, %v107
    %vm110 = vcmask 588800
    %v112 = vsel %vm110, %v75, 0
    %v115 = vsel %vm110, %v77, 0
    %117 = vmatprep.subr.mxu0 0.0
    %118 = vmatpush1.msra.mxu0 %v78
    %119 = vmatprep.subr.mxu0 0.0
    %120 = vmatpush1.msra.mxu0 %v79
    %121 = vmatprep.subr.mxu0 0.0
    %122 = vmatpush1.msra.mxu0 %v80
    %123 = vmatprep.subr.mxu0 0.0
    %124 = vmatpush1.msra.mxu0 %v81
    %125 = vmatprep.subr.mxu0 0.0
    %126 = vmatpush1.msra.mxu0 %v82
    %127 = vmatprep.subr.mxu0 0.0
    %128 = vmatpush1.msra.mxu0 %v83
    %129 = vmatprep.subr.mxu0 0.0
    %130 = vmatpush1.msra.mxu0 %v84
    %131 = vmatprep.subr.mxu0 0.0
    %132 = vmatpush1.msra.mxu0 %v85
    %133 = vmatprep.subr.mxu0 0.0
    %134 = vmatpush1.msra.mxu0 %v86
    %135 = vmatprep.subr.mxu0 0.0
    %136 = vmatpush1.msra.mxu0 %v87
    %137 = vmatprep.subr.mxu0 0.0
    %138 = vmatpush1.msra.mxu0 %v88
    %139 = vmatprep.subr.mxu0 0.0
    %140 = vmatpush1.msra.mxu0 %v89
    %141 = vmatprep.subr.mxu0 0.0
    %142 = vmatpush1.msra.mxu0 %v90
    %143 = vmatprep.subr.mxu0 0.0
    %144 = vmatpush1.msra.mxu0 %v91
    %145 = vmatprep.subr.mxu0 0.0
    %146 = vmatpush1.msra.mxu0 %v92
    %147 = vmatprep.subr.mxu0 0.0
    %148 = vmatpush1.msra.mxu0 %v93
    %149 = vmatprep.subr.mxu0 0.0
    %150 = vmatpush1.msra.mxu0 %v94
    %151 = vmatprep.subr.mxu0 0.0
    %152 = vmatpush1.msra.mxu0 %v95
    %153 = vmatprep.subr.mxu0 0.0
    %154 = vmatpush1.msra.mxu0 %v96
    %155 = vmatprep.subr.mxu0 0.0
    %156 = vmatpush1.msra.mxu0 %v97
    %157 = vmatprep.subr.mxu0 0.0
    %158 = vmatpush1.msra.mxu0 %v98
    %159 = vmatprep.subr.mxu0 0.0
    %160 = vmatpush1.msra.mxu0 %v99
    %161 = vmatprep.subr.mxu0 0.0
    %162 = vmatpush1.msra.mxu0 %v100
    %163 = vmatprep.subr.mxu0 0.0
    %164 = vmatpush1.msra.mxu0 %v101
    %165 = vmatprep.subr.mxu0 0.0
    %166 = vmatpush1.msra.mxu0 %v102
    %167 = vmatprep.subr.mxu0 0.0
    %168 = vmatpush1.msra.mxu0 0.0
    %169 = vmatprep.subr.mxu0 0.0
    %170 = vmatpush1.msra.mxu0 0.0
    %171 = vmatprep.subr.mxu0 0.0
    %172 = vmatpush1.msra.mxu0 0.0
    %173 = vmatprep.subr.mxu0 0.0
    %174 = vmatpush1.msra.mxu0 0.0
    %175 = vmatprep.subr.mxu0 0.0
    %176 = vmatpush1.msra.mxu0 0.0
    %177 = vmatprep.subr.mxu0 0.0
    %178 = vmatpush1.msra.mxu0 0.0
    %179 = vmatprep.subr.mxu0 0.0
    %180 = vmatpush1.msra.mxu0 0.0
    %181 = vmatprep.mubr.f32.mxu0 %v112
    %182 = vmatmul.mubr.f32.gmra.mrb[0].mxu0 %v74
    %v183 = vpop.f32.mrb[0].mxu0
    %v184 = vadd.f32 %v108, %v183
    %v185 = vpop.f32.mrb[0].mxu0
    %186 = vmatprep.mubr.f32.mxu0 %v115
    %187 = vmatmul.mubr.f32.gmra.mrb[0].mxu0 %v76
    %v188 = vpop.f32.mrb[0].mxu0
    %v189 = vadd.f32 %v108, %v188
    %v190 = vpop.f32.mrb[0].mxu0
    %191 = vdwg.mxu0
    %v192 = vld [vmem:[%s5] sm:$0xff]
    %v193 = vld [vmem:[%s5 + $0x8] sm:$0xff]
    %v194 = vld [vmem:[%s5 + $0x10] sm:$0xff]
    %v195 = vld [vmem:[%s5 + $0x18] sm:$0xff]
    %v196 = vld [vmem:[%s5 + $0x20] sm:$0xff]
    %v197 = vld [vmem:[%s5 + $0x28] sm:$0xff]
    %v198 = vld [vmem:[%s5 + $0x30] sm:$0xff]
    %v199 = vld [vmem:[%s5 + $0x38] sm:$0xff]
    %v200 = vld [vmem:[%s6] sm:$0x1]
    %v202 = vlaneseq
    %v203 = vshrl.u32 %v202, 7
    %v204 = vsub.s32 0, %v203
    %v205 = vrot.slane %v200, %v204
    %vm207 = vcmask 523264
    %v209 = vsel %vm207, %v184, 0
    %v212 = vsel %vm207, %v189, 0
    %214 = vmatprep.subr.mxu0 0.0
    %215 = vmatpush1.msra.mxu0 %v192
    %216 = vmatprep.subr.mxu0 0.0
    %217 = vmatpush1.msra.mxu0 %v193
    %218 = vmatprep.subr.mxu0 0.0
    %219 = vmatpush1.msra.mxu0 %v194
    %220 = vmatprep.subr.mxu0 0.0
    %221 = vmatpush1.msra.mxu0 %v195
    %222 = vmatprep.subr.mxu0 0.0
    %223 = vmatpush1.msra.mxu0 %v196
    %224 = vmatprep.subr.mxu0 0.0
    %225 = vmatpush1.msra.mxu0 %v197
    %226 = vmatprep.subr.mxu0 0.0
    %227 = vmatpush1.msra.mxu0 %v198
    %228 = vmatprep.subr.mxu0 0.0
    %229 = vmatpush1.msra.mxu0 %v199
    %230 = vmatprep.subr.mxu0 0.0
    %231 = vmatpush1.msra.mxu0 0.0
    %232 = vmatprep.subr.mxu0 0.0
    %233 = vmatpush1.msra.mxu0 0.0
    %234 = vmatprep.subr.mxu0 0.0
    %235 = vmatpush1.msra.mxu0 0.0
    %236 = vmatprep.subr.mxu0 0.0
    %237 = vmatpush1.msra.mxu0 0.0
    %238 = vmatprep.subr.mxu0 0.0
    %239 = vmatpush1.msra.mxu0 0.0
    %240 = vmatprep.subr.mxu0 0.0
    %241 = vmatpush1.msra.mxu0 0.0
    %242 = vmatprep.subr.mxu0 0.0
    %243 = vmatpush1.msra.mxu0 0.0
    %244 = vmatprep.subr.mxu0 0.0
    %245 = vmatpush1.msra.mxu0 0.0
    %246 = vmatprep.subr.mxu0 0.0
    %247 = vmatpush1.msra.mxu0 0.0
    %248 = vmatprep.subr.mxu0 0.0
    %249 = vmatpush1.msra.mxu0 0.0
    %250 = vmatprep.subr.mxu0 0.0
    %251 = vmatpush1.msra.mxu0 0.0
    %252 = vmatprep.subr.mxu0 0.0
    %253 = vmatpush1.msra.mxu0 0.0
    %254 = vmatprep.subr.mxu0 0.0
    %255 = vmatpush1.msra.mxu0 0.0
    %256 = vmatprep.subr.mxu0 0.0
    %257 = vmatpush1.msra.mxu0 0.0
    %258 = vmatprep.subr.mxu0 0.0
    %259 = vmatpush1.msra.mxu0 0.0
    %260 = vmatprep.subr.mxu0 0.0
    %261 = vmatpush1.msra.mxu0 0.0
    %262 = vmatprep.subr.mxu0 0.0
    %263 = vmatpush1.msra.mxu0 0.0
    %264 = vmatprep.subr.mxu0 0.0
    %265 = vmatpush1.msra.mxu0 0.0
    %266 = vmatprep.subr.mxu0 0.0
    %267 = vmatpush1.msra.mxu0 0.0
    %268 = vmatprep.subr.mxu0 0.0
    %269 = vmatpush1.msra.mxu0 0.0
    %270 = vmatprep.subr.mxu0 0.0
    %271 = vmatpush1.msra.mxu0 0.0
    %272 = vmatprep.subr.mxu0 0.0
    %273 = vmatpush1.msra.mxu0 0.0
    %274 = vmatprep.subr.mxu0 0.0
    %275 = vmatpush1.msra.mxu0 0.0
    %276 = vmatprep.subr.mxu0 0.0
    %277 = vmatpush1.msra.mxu0 0.0
    %278 = vmatprep.mubr.f32.mxu0 0.0
    %279 = vmatmul.mubr.f32.gmra.mrb[0].mxu0 %v209
    %v280 = vpop.f32.mrb[0].mxu0
    %v281 = vadd.f32 %v205, %v280
    %v282 = vpop.f32.mrb[0].mxu0
    %283 = vmatprep.mubr.f32.mxu0 0.0
    %284 = vmatmul.mubr.f32.gmra.mrb[0].mxu0 %v212
    %v285 = vpop.f32.mrb[0].mxu0
    %v286 = vadd.f32 %v205, %v285
    %v287 = vpop.f32.mrb[0].mxu0
    %288 = vdwg.mxu0
    %v289 = vtanh.pop %v281
    %v290 = vtanh.pop %v286
    %v291 = vld [vmem:[%s7] sm:$0xff]
    %v292 = vld [vmem:[%s7 + $0x8] sm:$0xff]
    %v293 = vld [vmem:[%s7 + $0x10] sm:$0xff]
    %v294 = vld [vmem:[%s7 + $0x18] sm:$0xff]
    %v295 = vld [vmem:[%s7 + $0x20] sm:$0xff]
    %v296 = vld [vmem:[%s7 + $0x28] sm:$0xff]
    %v297 = vld [vmem:[%s7 + $0x30] sm:$0xff]
    %v298 = vld [vmem:[%s7 + $0x38] sm:$0xff]
    %v299 = vld [vmem:[%s8] sm:$0x1]
    %v301 = vlaneseq
    %v302 = vshrl.u32 %v301, 7
    %v303 = vsub.s32 0, %v302
    %v304 = vrot.slane %v299, %v303
    %v307 = vsel %vm207, %v289, 0
    %v310 = vsel %vm207, %v290, 0
    %312 = vmatprep.subr.mxu0 0.0
    %313 = vmatpush1.msra.mxu0 %v291
    %314 = vmatprep.subr.mxu0 0.0
    %315 = vmatpush1.msra.mxu0 %v292
    %316 = vmatprep.subr.mxu0 0.0
    %317 = vmatpush1.msra.mxu0 %v293
    %318 = vmatprep.subr.mxu0 0.0
    %319 = vmatpush1.msra.mxu0 %v294
    %320 = vmatprep.subr.mxu0 0.0
    %321 = vmatpush1.msra.mxu0 %v295
    %322 = vmatprep.subr.mxu0 0.0
    %323 = vmatpush1.msra.mxu0 %v296
    %324 = vmatprep.subr.mxu0 0.0
    %325 = vmatpush1.msra.mxu0 %v297
    %326 = vmatprep.subr.mxu0 0.0
    %327 = vmatpush1.msra.mxu0 %v298
    %328 = vmatprep.subr.mxu0 0.0
    %329 = vmatpush1.msra.mxu0 0.0
    %330 = vmatprep.subr.mxu0 0.0
    %331 = vmatpush1.msra.mxu0 0.0
    %332 = vmatprep.subr.mxu0 0.0
    %333 = vmatpush1.msra.mxu0 0.0
    %334 = vmatprep.subr.mxu0 0.0
    %335 = vmatpush1.msra.mxu0 0.0
    %336 = vmatprep.subr.mxu0 0.0
    %337 = vmatpush1.msra.mxu0 0.0
    %338 = vmatprep.subr.mxu0 0.0
    %339 = vmatpush1.msra.mxu0 0.0
    %340 = vmatprep.subr.mxu0 0.0
    %341 = vmatpush1.msra.mxu0 0.0
    %342 = vmatprep.subr.mxu0 0.0
    %343 = vmatpush1.msra.mxu0 0.0
    %344 = vmatprep.subr.mxu0 0.0
    %345 = vmatpush1.msra.mxu0 0.0
    %346 = vmatprep.subr.mxu0 0.0
    %347 = vmatpush1.msra.mxu0 0.0
    %348 = vmatprep.subr.mxu0 0.0
    %349 = vmatpush1.msra.mxu0 0.0
    %350 = vmatprep.subr.mxu0 0.0
    %351 = vmatpush1.msra.mxu0 0.0
    %352 = vmatprep.subr.mxu0 0.0
    %353 = vmatpush1.msra.mxu0 0.0
    %354 = vmatprep.subr.mxu0 0.0
    %355 = vmatpush1.msra.mxu0 0.0
    %356 = vmatprep.subr.mxu0 0.0
    %357 = vmatpush1.msra.mxu0 0.0
    %358 = vmatprep.subr.mxu0 0.0
    %359 = vmatpush1.msra.mxu0 0.0
    %360 = vmatprep.subr.mxu0 0.0
    %361 = vmatpush1.msra.mxu0 0.0
    %362 = vmatprep.subr.mxu0 0.0
    %363 = vmatpush1.msra.mxu0 0.0
    %364 = vmatprep.subr.mxu0 0.0
    %365 = vmatpush1.msra.mxu0 0.0
    %366 = vmatprep.subr.mxu0 0.0
    %367 = vmatpush1.msra.mxu0 0.0
    %368 = vmatprep.subr.mxu0 0.0
    %369 = vmatpush1.msra.mxu0 0.0
    %370 = vmatprep.subr.mxu0 0.0
    %371 = vmatpush1.msra.mxu0 0.0
    %372 = vmatprep.subr.mxu0 0.0
    %373 = vmatpush1.msra.mxu0 0.0
    %374 = vmatprep.subr.mxu0 0.0
    %375 = vmatpush1.msra.mxu0 0.0
    %376 = vmatprep.mubr.f32.mxu0 0.0
    %377 = vmatmul.mubr.f32.gmra.mrb[0].mxu0 %v307
    %v378 = vpop.f32.mrb[0].mxu0
    %v379 = vadd.f32 %v304, %v378
    %v380 = vpop.f32.mrb[0].mxu0
    %381 = vmatprep.mubr.f32.mxu0 0.0
    %382 = vmatmul.mubr.f32.gmra.mrb[0].mxu0 %v310
    %v383 = vpop.f32.mrb[0].mxu0
    %v384 = vadd.f32 %v304, %v383
    %v385 = vpop.f32.mrb[0].mxu0
    %386 = vdwg.mxu0
    %v387 = vmul.f32 %v379, %v379
    %v388 = vmul.f32 %v384, %v384
    %vm389 = vcmask 261120
    %v390 = vsel %vm389, %v387, 0.0
    %391 = vadd.xlane.f32.xlu0 %v390
    %v392 = vpop.xlane.xlu0 %391
    %v393 = vsel %vm389, %v388, 0.0
    %394 = vadd.xlane.f32.xlu0 %v393
    %v395 = vpop.xlane.xlu0 %394
    %v396 = vmax.f32 %v392, 1e-24
    %v397 = vmax.f32 %v395, 1e-24
    %v398 = vrsqrt.pop %v396
    %v399 = vrsqrt.pop %v397
    %v400 = vmul.f32 %v379, %v398
    %v401 = vmul.f32 %v384, %v399
    %v402 = vld [vmem:[%s10] sm:$0xff]
    %v403 = vld [vmem:[%s10 + $0x8] sm:$0xff]
    %v404 = vld [vmem:[%s10 + $0x10] sm:$0xff]
    %v405 = vld [vmem:[%s10 + $0x18] sm:$0xff]
    %v406 = vld [vmem:[%s10 + $0x20] sm:$0xff]
    %v407 = vld [vmem:[%s10 + $0x28] sm:$0xff]
    %v408 = vld [vmem:[%s10 + $0x30] sm:$0xff]
    %v409 = vld [vmem:[%s10 + $0x38] sm:$0xff]
    %v410 = vld [vmem:[%s10 + $0x40] sm:$0xff]
    %v411 = vld [vmem:[%s10 + $0x48] sm:$0xff]
    %v412 = vld [vmem:[%s10 + $0x50] sm:$0xff]
    %v413 = vld [vmem:[%s10 + $0x58] sm:$0xff]
    %v414 = vld [vmem:[%s10 + $0x60] sm:$0xff]
    %v415 = vld [vmem:[%s10 + $0x68] sm:$0xff]
    %v416 = vld [vmem:[%s10 + $0x70] sm:$0xff]
    %v417 = vld [vmem:[%s10 + $0x78] sm:$0xff]
    %v419 = vsel %vm389, %v400, 0
    %v422 = vsel %vm389, %v401, 0
    %424 = vmatprep.subr.mxu0 %v403
    %425 = vmatpush1.msra.mxu0 %v402
    %426 = vmatprep.subr.mxu0 %v407
    %427 = vmatpush1.msra.mxu0 %v406
    %428 = vmatprep.subr.mxu0 %v411
    %429 = vmatpush1.msra.mxu0 %v410
    %430 = vmatprep.subr.mxu0 %v415
    %431 = vmatpush1.msra.mxu0 %v414
    %432 = vmatprep.subr.mxu0 0.0
    %433 = vmatpush1.msra.mxu0 0.0
    %434 = vmatprep.subr.mxu0 0.0
    %435 = vmatpush1.msra.mxu0 0.0
    %436 = vmatprep.subr.mxu0 0.0
    %437 = vmatpush1.msra.mxu0 0.0
    %438 = vmatprep.subr.mxu0 0.0
    %439 = vmatpush1.msra.mxu0 0.0
    %440 = vmatprep.subr.mxu0 0.0
    %441 = vmatpush1.msra.mxu0 0.0
    %442 = vmatprep.subr.mxu0 0.0
    %443 = vmatpush1.msra.mxu0 0.0
    %444 = vmatprep.subr.mxu0 0.0
    %445 = vmatpush1.msra.mxu0 0.0
    %446 = vmatprep.subr.mxu0 0.0
    %447 = vmatpush1.msra.mxu0 0.0
    %448 = vmatprep.subr.mxu0 0.0
    %449 = vmatpush1.msra.mxu0 0.0
    %450 = vmatprep.subr.mxu0 0.0
    %451 = vmatpush1.msra.mxu0 0.0
    %452 = vmatprep.subr.mxu0 0.0
    %453 = vmatpush1.msra.mxu0 0.0
    %454 = vmatprep.subr.mxu0 0.0
    %455 = vmatpush1.msra.mxu0 0.0
    %456 = vmatprep.subr.mxu0 0.0
    %457 = vmatpush1.msra.mxu0 0.0
    %458 = vmatprep.subr.mxu0 0.0
    %459 = vmatpush1.msra.mxu0 0.0
    %460 = vmatprep.subr.mxu0 0.0
    %461 = vmatpush1.msra.mxu0 0.0
    %462 = vmatprep.subr.mxu0 0.0
    %463 = vmatpush1.msra.mxu0 0.0
    %464 = vmatprep.subr.mxu0 0.0
    %465 = vmatpush1.msra.mxu0 0.0
    %466 = vmatprep.subr.mxu0 0.0
    %467 = vmatpush1.msra.mxu0 0.0
    %468 = vmatprep.subr.mxu0 0.0
    %469 = vmatpush1.msra.mxu0 0.0
    %470 = vmatprep.subr.mxu0 0.0
    %471 = vmatpush1.msra.mxu0 0.0
    %472 = vmatprep.subr.mxu0 0.0
    %473 = vmatpush1.msra.mxu0 0.0
    %474 = vmatprep.subr.mxu0 0.0
    %475 = vmatpush1.msra.mxu0 0.0
    %476 = vmatprep.subr.mxu0 0.0
    %477 = vmatpush1.msra.mxu0 0.0
    %478 = vmatprep.subr.mxu0 0.0
    %479 = vmatpush1.msra.mxu0 0.0
    %480 = vmatprep.subr.mxu0 0.0
    %481 = vmatpush1.msra.mxu0 0.0
    %482 = vmatprep.subr.mxu0 0.0
    %483 = vmatpush1.msra.mxu0 0.0
    %484 = vmatprep.subr.mxu0 0.0
    %485 = vmatpush1.msra.mxu0 0.0
    %486 = vmatprep.subr.mxu0 0.0
    %487 = vmatpush1.msra.mxu0 0.0
    %488 = vmatprep.mubr.f32.mxu0 0.0
    %489 = vmatmul.mubr.f32.gmra.mrb[0].mxu0 %v419
    %v490 = vpop.f32.mrb[0].mxu0
    %v491 = vadd.f32 0.0, %v490
    %v492 = vpop.f32.mrb[0].mxu0
    %v493 = vadd.f32 0.0, %v492
    %494 = vmatprep.mubr.f32.mxu0 0.0
    %495 = vmatmul.mubr.f32.gmra.mrb[0].mxu0 %v422
    %v496 = vpop.f32.mrb[0].mxu0
    %v497 = vadd.f32 0.0, %v496
    %v498 = vpop.f32.mrb[0].mxu0
    %v499 = vadd.f32 0.0, %v498
    %500 = vdwg.mxu0
    %501 = vmatprep.subr.mxu0 %v405
    %502 = vmatpush1.msra.mxu0 %v404
    %503 = vmatprep.subr.mxu0 %v409
    %504 = vmatpush1.msra.mxu0 %v408
    %505 = vmatprep.subr.mxu0 %v413
    %506 = vmatpush1.msra.mxu0 %v412
    %507 = vmatprep.subr.mxu0 %v417
    %508 = vmatpush1.msra.mxu0 %v416
    %509 = vmatprep.subr.mxu0 0.0
    %510 = vmatpush1.msra.mxu0 0.0
    %511 = vmatprep.subr.mxu0 0.0
    %512 = vmatpush1.msra.mxu0 0.0
    %513 = vmatprep.subr.mxu0 0.0
    %514 = vmatpush1.msra.mxu0 0.0
    %515 = vmatprep.subr.mxu0 0.0
    %516 = vmatpush1.msra.mxu0 0.0
    %517 = vmatprep.subr.mxu0 0.0
    %518 = vmatpush1.msra.mxu0 0.0
    %519 = vmatprep.subr.mxu0 0.0
    %520 = vmatpush1.msra.mxu0 0.0
    %521 = vmatprep.subr.mxu0 0.0
    %522 = vmatpush1.msra.mxu0 0.0
    %523 = vmatprep.subr.mxu0 0.0
    %524 = vmatpush1.msra.mxu0 0.0
    %525 = vmatprep.subr.mxu0 0.0
    %526 = vmatpush1.msra.mxu0 0.0
    %527 = vmatprep.subr.mxu0 0.0
    %528 = vmatpush1.msra.mxu0 0.0
    %529 = vmatprep.subr.mxu0 0.0
    %530 = vmatpush1.msra.mxu0 0.0
    %531 = vmatprep.subr.mxu0 0.0
    %532 = vmatpush1.msra.mxu0 0.0
    %533 = vmatprep.subr.mxu0 0.0
    %534 = vmatpush1.msra.mxu0 0.0
    %535 = vmatprep.subr.mxu0 0.0
    %536 = vmatpush1.msra.mxu0 0.0
    %537 = vmatprep.subr.mxu0 0.0
    %538 = vmatpush1.msra.mxu0 0.0
    %539 = vmatprep.subr.mxu0 0.0
    %540 = vmatpush1.msra.mxu0 0.0
    %541 = vmatprep.subr.mxu0 0.0
    %542 = vmatpush1.msra.mxu0 0.0
    %543 = vmatprep.subr.mxu0 0.0
    %544 = vmatpush1.msra.mxu0 0.0
    %545 = vmatprep.subr.mxu0 0.0
    %546 = vmatpush1.msra.mxu0 0.0
    %547 = vmatprep.subr.mxu0 0.0
    %548 = vmatpush1.msra.mxu0 0.0
    %549 = vmatprep.subr.mxu0 0.0
    %550 = vmatpush1.msra.mxu0 0.0
    %551 = vmatprep.subr.mxu0 0.0
    %552 = vmatpush1.msra.mxu0 0.0
    %553 = vmatprep.subr.mxu0 0.0
    %554 = vmatpush1.msra.mxu0 0.0
    %555 = vmatprep.subr.mxu0 0.0
    %556 = vmatpush1.msra.mxu0 0.0
    %557 = vmatprep.subr.mxu0 0.0
    %558 = vmatpush1.msra.mxu0 0.0
    %559 = vmatprep.subr.mxu0 0.0
    %560 = vmatpush1.msra.mxu0 0.0
    %561 = vmatprep.subr.mxu0 0.0
    %562 = vmatpush1.msra.mxu0 0.0
    %563 = vmatprep.subr.mxu0 0.0
    %564 = vmatpush1.msra.mxu0 0.0
    %565 = vmatprep.mubr.f32.mxu0 0.0
    %566 = vmatmul.mubr.f32.gmra.mrb[0].mxu0 %v419
    %v567 = vpop.f32.mrb[0].mxu0
    %v568 = vadd.f32 0.0, %v567
    %v569 = vpop.f32.mrb[0].mxu0
    %v570 = vadd.f32 0.0, %v569
    %571 = vmatprep.mubr.f32.mxu0 0.0
    %572 = vmatmul.mubr.f32.gmra.mrb[0].mxu0 %v422
    %v573 = vpop.f32.mrb[0].mxu0
    %v574 = vadd.f32 0.0, %v573
    %v575 = vpop.f32.mrb[0].mxu0
    %v576 = vadd.f32 0.0, %v575
    %577 = vdwg.mxu0
    %v578 = vmul.f32 %v402, %v402
    %v579 = vmul.f32 %v403, %v403
    %v580 = vmul.f32 %v404, %v404
    %v581 = vmul.f32 %v405, %v405
    %v582 = vmul.f32 %v406, %v406
    %v583 = vmul.f32 %v407, %v407
    %v584 = vmul.f32 %v408, %v408
    %v585 = vmul.f32 %v409, %v409
    %v586 = vmul.f32 %v410, %v410
    %v587 = vmul.f32 %v411, %v411
    %v588 = vmul.f32 %v412, %v412
    %v589 = vmul.f32 %v413, %v413
    %v590 = vmul.f32 %v414, %v414
    %v591 = vmul.f32 %v415, %v415
    %v592 = vmul.f32 %v416, %v416
    %v593 = vmul.f32 %v417, %v417
    %v594 = vadd.f32 %v578, %v582
    %v595 = vadd.f32 %v594, %v586
    %v596 = vadd.f32 %v595, %v590
    %v597 = vrot.slane %v596, 4
    %v598 = vadd.f32 %v596, %v597
    %v599 = vrot.slane %v598, 2
    %v600 = vadd.f32 %v598, %v599
    %v601 = vrot.slane %v600, 1
    %v602 = vadd.f32 %v600, %v601
    %v603 = vadd.f32 %v579, %v583
    %v604 = vadd.f32 %v603, %v587
    %v605 = vadd.f32 %v604, %v591
    %v606 = vrot.slane %v605, 4
    %v607 = vadd.f32 %v605, %v606
    %v608 = vrot.slane %v607, 2
    %v609 = vadd.f32 %v607, %v608
    %v610 = vrot.slane %v609, 1
    %v611 = vadd.f32 %v609, %v610
    %v612 = vadd.f32 %v580, %v584
    %v613 = vadd.f32 %v612, %v588
    %v614 = vadd.f32 %v613, %v592
    %v615 = vrot.slane %v614, 4
    %v616 = vadd.f32 %v614, %v615
    %v617 = vrot.slane %v616, 2
    %v618 = vadd.f32 %v616, %v617
    %v619 = vrot.slane %v618, 1
    %v620 = vadd.f32 %v618, %v619
    %v621 = vadd.f32 %v581, %v585
    %v622 = vadd.f32 %v621, %v589
    %v623 = vadd.f32 %v622, %v593
    %v624 = vrot.slane %v623, 4
    %v625 = vadd.f32 %v623, %v624
    %v626 = vrot.slane %v625, 2
    %v627 = vadd.f32 %v625, %v626
    %v628 = vrot.slane %v627, 1
    %v629 = vadd.f32 %v627, %v628
    %v630 = vmul.f32 %v491, 2.0
    %v631 = vmul.f32 %v493, 2.0
    %v632 = vmul.f32 %v568, 2.0
    %v633 = vmul.f32 %v570, 2.0
    %v634 = vmul.f32 %v497, 2.0
    %v635 = vmul.f32 %v499, 2.0
    %v636 = vmul.f32 %v574, 2.0
    %v637 = vmul.f32 %v576, 2.0
    %v638 = vsub.f32 %v602, %v630
    %v639 = vsub.f32 %v611, %v631
    %v640 = vsub.f32 %v620, %v632
    %v641 = vsub.f32 %v629, %v633
    %v642 = vsub.f32 %v602, %v634
    %v643 = vsub.f32 %v611, %v635
    %v644 = vsub.f32 %v620, %v636
    %v645 = vsub.f32 %v629, %v637
    %v646 = vmin.f32 %v638, %v640
    %v647 = vmin.f32 %v639, %v641
    %v648 = vmin.f32 %v646, %v647
    %649 = vmin.xlane.f32.xlu0 %v648
    %v650 = vpop.xlane.xlu0 %649
    %v651 = vmin.f32 %v642, %v644
    %v652 = vmin.f32 %v643, %v645
    %v653 = vmin.f32 %v651, %v652
    %654 = vmin.xlane.f32.xlu0 %v653
    %v655 = vpop.xlane.xlu0 %654
    %v656 = vlaneseq
    %v657 = vand.u32 %v656, 127
    %v658 = vadd.s32 %v657, 128
    %v659 = vadd.s32 %v657, 256
    %v660 = vadd.s32 %v657, 384
    %vm661 = vcmp.eq.f32.partialorder %v638, %v650
    %vm662 = vcmp.eq.f32.partialorder %v639, %v650
    %vm663 = vcmp.eq.f32.partialorder %v640, %v650
    %vm664 = vcmp.eq.f32.partialorder %v641, %v650
    %vm665 = vcmp.eq.f32.partialorder %v642, %v655
    %vm666 = vcmp.eq.f32.partialorder %v643, %v655
    %vm667 = vcmp.eq.f32.partialorder %v644, %v655
    %vm668 = vcmp.eq.f32.partialorder %v645, %v655
    %v669 = vsel %vm661, %v657, 512
    %v670 = vsel %vm662, %v658, 512
    %v671 = vsel %vm663, %v659, 512
    %v672 = vsel %vm664, %v660, 512
    %v673 = vsel %vm665, %v657, 512
    %v674 = vsel %vm666, %v658, 512
    %v675 = vsel %vm667, %v659, 512
    %v676 = vsel %vm668, %v660, 512
    %vm677 = vcmp.lt.s32.totalorder %v669, %v671
    %v678 = vsel %vm677, %v669, %v671
    %vm679 = vcmp.lt.s32.totalorder %v670, %v672
    %v680 = vsel %vm679, %v670, %v672
    %vm681 = vcmp.lt.s32.totalorder %v678, %v680
    %v682 = vsel %vm681, %v678, %v680
    %v683 = vand.u32 %v682, 65535
    %v684 = vshra.s32 %v682, 16
    %v685 = vcvt.s32.f32 %v683
    %v686 = vcvt.s32.f32 %v684
    %687 = vmin.xlane.f32.xlu0 %v686
    %v688 = vpop.xlane.xlu0 %687
    %vm689 = vcmp.eq.f32.partialorder %v686, %v688
    %v690 = vsel %vm689, %v685, inf
    %691 = vmin.xlane.f32.xlu0 %v690
    %v692 = vpop.xlane.xlu0 %691
    %v693 = vcvt.f32.s32 %v692
    %v694 = vcvt.f32.s32 %v688
    %v695 = vshll.u32 %v694, 16
    %v696 = vadd.s32 %v695, %v693
    %vm697 = vcmp.lt.s32.totalorder %v673, %v675
    %v698 = vsel %vm697, %v673, %v675
    %vm699 = vcmp.lt.s32.totalorder %v674, %v676
    %v700 = vsel %vm699, %v674, %v676
    %vm701 = vcmp.lt.s32.totalorder %v698, %v700
    %v702 = vsel %vm701, %v698, %v700
    %v703 = vand.u32 %v702, 65535
    %v704 = vshra.s32 %v702, 16
    %v705 = vcvt.s32.f32 %v703
    %v706 = vcvt.s32.f32 %v704
    %707 = vmin.xlane.f32.xlu0 %v706
    %v708 = vpop.xlane.xlu0 %707
    %vm709 = vcmp.eq.f32.partialorder %v706, %v708
    %v710 = vsel %vm709, %v705, inf
    %711 = vmin.xlane.f32.xlu0 %v710
    %v712 = vpop.xlane.xlu0 %711
    %v713 = vcvt.f32.s32 %v712
    %v714 = vcvt.f32.s32 %v708
    %v715 = vshll.u32 %v714, 16
    %v716 = vadd.s32 %v715, %v713
    %vm717 = vcmp.eq.s32.totalorder %v657, %v696
    %vm718 = vcmp.eq.s32.totalorder %v658, %v696
    %vm719 = vcmp.eq.s32.totalorder %v659, %v696
    %vm720 = vcmp.eq.s32.totalorder %v660, %v696
    %vm721 = vcmp.eq.s32.totalorder %v657, %v716
    %vm722 = vcmp.eq.s32.totalorder %v658, %v716
    %vm723 = vcmp.eq.s32.totalorder %v659, %v716
    %vm724 = vcmp.eq.s32.totalorder %v660, %v716
    %v725 = vsel %vm717, 1, 0
    %v726 = vsel %vm718, 1, 0
    %v727 = vsel %vm719, 1, 0
    %v728 = vsel %vm720, 1, 0
    %v729 = vsel %vm721, 1, 0
    %v730 = vsel %vm722, 1, 0
    %v731 = vsel %vm723, 1, 0
    %v732 = vsel %vm724, 1, 0
    %v733 = vcvt.s32.f32 %v725
    %v734 = vcvt.s32.f32 %v726
    %v735 = vcvt.s32.f32 %v727
    %v736 = vcvt.s32.f32 %v728
    %v737 = vcvt.s32.f32 %v729
    %v738 = vcvt.s32.f32 %v730
    %v739 = vcvt.s32.f32 %v731
    %v740 = vcvt.s32.f32 %v732
    %v741 = vld [vmem:[%s9] sm:$0xff]
    %v742 = vld [vmem:[%s9 + $0x8] sm:$0xff]
    %v743 = vld [vmem:[%s9 + $0x10] sm:$0xff]
    %v744 = vld [vmem:[%s9 + $0x18] sm:$0xff]
    %v745 = vld [vmem:[%s9 + $0x20] sm:$0xff]
    %v746 = vld [vmem:[%s9 + $0x28] sm:$0xff]
    %v747 = vld [vmem:[%s9 + $0x30] sm:$0xff]
    %v748 = vld [vmem:[%s9 + $0x38] sm:$0xff]
    %v749 = vld [vmem:[%s9 + $0x40] sm:$0xff]
    %v750 = vld [vmem:[%s9 + $0x48] sm:$0xff]
    %v751 = vld [vmem:[%s9 + $0x50] sm:$0xff]
    %v752 = vld [vmem:[%s9 + $0x58] sm:$0xff]
    %v753 = vld [vmem:[%s9 + $0x60] sm:$0xff]
    %v754 = vld [vmem:[%s9 + $0x68] sm:$0xff]
    %v755 = vld [vmem:[%s9 + $0x70] sm:$0xff]
    %v756 = vld [vmem:[%s9 + $0x78] sm:$0xff]
    %v757 = vld [vmem:[%s9 + $0x80] sm:$0xff]
    %v758 = vld [vmem:[%s9 + $0x88] sm:$0xff]
    %v759 = vld [vmem:[%s9 + $0x90] sm:$0xff]
    %v760 = vld [vmem:[%s9 + $0x98] sm:$0xff]
    %v761 = vld [vmem:[%s9 + $0xa0] sm:$0xff]
    %v762 = vld [vmem:[%s9 + $0xa8] sm:$0xff]
    %v763 = vld [vmem:[%s9 + $0xb0] sm:$0xff]
    %v764 = vld [vmem:[%s9 + $0xb8] sm:$0xff]
    %v765 = vld [vmem:[%s9 + $0xc0] sm:$0xff]
    %v766 = vld [vmem:[%s9 + $0xc8] sm:$0xff]
    %v767 = vld [vmem:[%s9 + $0xd0] sm:$0xff]
    %v768 = vld [vmem:[%s9 + $0xd8] sm:$0xff]
    %v769 = vld [vmem:[%s9 + $0xe0] sm:$0xff]
    %v770 = vld [vmem:[%s9 + $0xe8] sm:$0xff]
    %v771 = vld [vmem:[%s9 + $0xf0] sm:$0xff]
    %v772 = vld [vmem:[%s9 + $0xf8] sm:$0xff]
    %v773 = vld [vmem:[%s9 + $0x100] sm:$0xff]
    %v774 = vld [vmem:[%s9 + $0x108] sm:$0xff]
    %v775 = vld [vmem:[%s9 + $0x110] sm:$0xff]
    %v776 = vld [vmem:[%s9 + $0x118] sm:$0xff]
    %v777 = vld [vmem:[%s9 + $0x120] sm:$0xff]
    %v778 = vld [vmem:[%s9 + $0x128] sm:$0xff]
    %v779 = vld [vmem:[%s9 + $0x130] sm:$0xff]
    %v780 = vld [vmem:[%s9 + $0x138] sm:$0xff]
    %v781 = vld [vmem:[%s9 + $0x140] sm:$0xff]
    %v782 = vld [vmem:[%s9 + $0x148] sm:$0xff]
    %v783 = vld [vmem:[%s9 + $0x150] sm:$0xff]
    %v784 = vld [vmem:[%s9 + $0x158] sm:$0xff]
    %v785 = vld [vmem:[%s9 + $0x160] sm:$0xff]
    %v786 = vld [vmem:[%s9 + $0x168] sm:$0xff]
    %v787 = vld [vmem:[%s9 + $0x170] sm:$0xff]
    %v788 = vld [vmem:[%s9 + $0x178] sm:$0xff]
    %v789 = vld [vmem:[%s9 + $0x180] sm:$0xff]
    %v790 = vld [vmem:[%s9 + $0x188] sm:$0xff]
    %v791 = vld [vmem:[%s9 + $0x190] sm:$0xff]
    %v792 = vld [vmem:[%s9 + $0x198] sm:$0xff]
    %v793 = vld [vmem:[%s9 + $0x1a0] sm:$0xff]
    %v794 = vld [vmem:[%s9 + $0x1a8] sm:$0xff]
    %v795 = vld [vmem:[%s9 + $0x1b0] sm:$0xff]
    %v796 = vld [vmem:[%s9 + $0x1b8] sm:$0xff]
    %v797 = vld [vmem:[%s9 + $0x1c0] sm:$0xff]
    %v798 = vld [vmem:[%s9 + $0x1c8] sm:$0xff]
    %v799 = vld [vmem:[%s9 + $0x1d0] sm:$0xff]
    %v800 = vld [vmem:[%s9 + $0x1d8] sm:$0xff]
    %v801 = vld [vmem:[%s9 + $0x1e0] sm:$0xff]
    %v802 = vld [vmem:[%s9 + $0x1e8] sm:$0xff]
    %v803 = vld [vmem:[%s9 + $0x1f0] sm:$0xff]
    %v804 = vld [vmem:[%s9 + $0x1f8] sm:$0xff]
    %805 = vmatprep.subr.mxu0 0.0
    %806 = vmatpush1.msra.mxu0 %v741
    %807 = vmatprep.subr.mxu0 0.0
    %808 = vmatpush1.msra.mxu0 %v742
    %809 = vmatprep.subr.mxu0 0.0
    %810 = vmatpush1.msra.mxu0 %v743
    %811 = vmatprep.subr.mxu0 0.0
    %812 = vmatpush1.msra.mxu0 %v744
    %813 = vmatprep.subr.mxu0 0.0
    %814 = vmatpush1.msra.mxu0 %v745
    %815 = vmatprep.subr.mxu0 0.0
    %816 = vmatpush1.msra.mxu0 %v746
    %817 = vmatprep.subr.mxu0 0.0
    %818 = vmatpush1.msra.mxu0 %v747
    %819 = vmatprep.subr.mxu0 0.0
    %820 = vmatpush1.msra.mxu0 %v748
    %821 = vmatprep.subr.mxu0 0.0
    %822 = vmatpush1.msra.mxu0 %v749
    %823 = vmatprep.subr.mxu0 0.0
    %824 = vmatpush1.msra.mxu0 %v750
    %825 = vmatprep.subr.mxu0 0.0
    %826 = vmatpush1.msra.mxu0 %v751
    %827 = vmatprep.subr.mxu0 0.0
    %828 = vmatpush1.msra.mxu0 %v752
    %829 = vmatprep.subr.mxu0 0.0
    %830 = vmatpush1.msra.mxu0 %v753
    %831 = vmatprep.subr.mxu0 0.0
    %832 = vmatpush1.msra.mxu0 %v754
    %833 = vmatprep.subr.mxu0 0.0
    %834 = vmatpush1.msra.mxu0 %v755
    %835 = vmatprep.subr.mxu0 0.0
    %836 = vmatpush1.msra.mxu0 %v756
    %837 = vmatprep.subr.mxu0 0.0
    %838 = vmatpush1.msra.mxu0 %v757
    %839 = vmatprep.subr.mxu0 0.0
    %840 = vmatpush1.msra.mxu0 %v758
    %841 = vmatprep.subr.mxu0 0.0
    %842 = vmatpush1.msra.mxu0 %v759
    %843 = vmatprep.subr.mxu0 0.0
    %844 = vmatpush1.msra.mxu0 %v760
    %845 = vmatprep.subr.mxu0 0.0
    %846 = vmatpush1.msra.mxu0 %v761
    %847 = vmatprep.subr.mxu0 0.0
    %848 = vmatpush1.msra.mxu0 %v762
    %849 = vmatprep.subr.mxu0 0.0
    %850 = vmatpush1.msra.mxu0 %v763
    %851 = vmatprep.subr.mxu0 0.0
    %852 = vmatpush1.msra.mxu0 %v764
    %853 = vmatprep.subr.mxu0 0.0
    %854 = vmatpush1.msra.mxu0 %v765
    %855 = vmatprep.subr.mxu0 0.0
    %856 = vmatpush1.msra.mxu0 %v766
    %857 = vmatprep.subr.mxu0 0.0
    %858 = vmatpush1.msra.mxu0 %v767
    %859 = vmatprep.subr.mxu0 0.0
    %860 = vmatpush1.msra.mxu0 %v768
    %861 = vmatprep.subr.mxu0 0.0
    %862 = vmatpush1.msra.mxu0 %v769
    %863 = vmatprep.subr.mxu0 0.0
    %864 = vmatpush1.msra.mxu0 %v770
    %865 = vmatprep.subr.mxu0 0.0
    %866 = vmatpush1.msra.mxu0 %v771
    %867 = vmatprep.subr.mxu0 0.0
    %868 = vmatpush1.msra.mxu0 %v772
    %869 = vmatprep.mubr.f32.mxu0 %v734
    %870 = vmatmul.mubr.f32.gmra.mrb[0].mxu0 %v733
    %v871 = vpop.f32.mrb[0].mxu0
    %v872 = vadd.f32 0.0, %v871
    %v873 = vpop.f32.mrb[0].mxu0
    %874 = vmatprep.mubr.f32.mxu0 %v738
    %875 = vmatmul.mubr.f32.gmra.mrb[0].mxu0 %v737
    %v876 = vpop.f32.mrb[0].mxu0
    %v877 = vadd.f32 0.0, %v876
    %v878 = vpop.f32.mrb[0].mxu0
    %879 = vdwg.mxu0
    %880 = vmatprep.subr.mxu0 0.0
    %881 = vmatpush1.msra.mxu0 %v773
    %882 = vmatprep.subr.mxu0 0.0
    %883 = vmatpush1.msra.mxu0 %v774
    %884 = vmatprep.subr.mxu0 0.0
    %885 = vmatpush1.msra.mxu0 %v775
    %886 = vmatprep.subr.mxu0 0.0
    %887 = vmatpush1.msra.mxu0 %v776
    %888 = vmatprep.subr.mxu0 0.0
    %889 = vmatpush1.msra.mxu0 %v777
    %890 = vmatprep.subr.mxu0 0.0
    %891 = vmatpush1.msra.mxu0 %v778
    %892 = vmatprep.subr.mxu0 0.0
    %893 = vmatpush1.msra.mxu0 %v779
    %894 = vmatprep.subr.mxu0 0.0
    %895 = vmatpush1.msra.mxu0 %v780
    %896 = vmatprep.subr.mxu0 0.0
    %897 = vmatpush1.msra.mxu0 %v781
    %898 = vmatprep.subr.mxu0 0.0
    %899 = vmatpush1.msra.mxu0 %v782
    %900 = vmatprep.subr.mxu0 0.0
    %901 = vmatpush1.msra.mxu0 %v783
    %902 = vmatprep.subr.mxu0 0.0
    %903 = vmatpush1.msra.mxu0 %v784
    %904 = vmatprep.subr.mxu0 0.0
    %905 = vmatpush1.msra.mxu0 %v785
    %906 = vmatprep.subr.mxu0 0.0
    %907 = vmatpush1.msra.mxu0 %v786
    %908 = vmatprep.subr.mxu0 0.0
    %909 = vmatpush1.msra.mxu0 %v787
    %910 = vmatprep.subr.mxu0 0.0
    %911 = vmatpush1.msra.mxu0 %v788
    %912 = vmatprep.subr.mxu0 0.0
    %913 = vmatpush1.msra.mxu0 %v789
    %914 = vmatprep.subr.mxu0 0.0
    %915 = vmatpush1.msra.mxu0 %v790
    %916 = vmatprep.subr.mxu0 0.0
    %917 = vmatpush1.msra.mxu0 %v791
    %918 = vmatprep.subr.mxu0 0.0
    %919 = vmatpush1.msra.mxu0 %v792
    %920 = vmatprep.subr.mxu0 0.0
    %921 = vmatpush1.msra.mxu0 %v793
    %922 = vmatprep.subr.mxu0 0.0
    %923 = vmatpush1.msra.mxu0 %v794
    %924 = vmatprep.subr.mxu0 0.0
    %925 = vmatpush1.msra.mxu0 %v795
    %926 = vmatprep.subr.mxu0 0.0
    %927 = vmatpush1.msra.mxu0 %v796
    %928 = vmatprep.subr.mxu0 0.0
    %929 = vmatpush1.msra.mxu0 %v797
    %930 = vmatprep.subr.mxu0 0.0
    %931 = vmatpush1.msra.mxu0 %v798
    %932 = vmatprep.subr.mxu0 0.0
    %933 = vmatpush1.msra.mxu0 %v799
    %934 = vmatprep.subr.mxu0 0.0
    %935 = vmatpush1.msra.mxu0 %v800
    %936 = vmatprep.subr.mxu0 0.0
    %937 = vmatpush1.msra.mxu0 %v801
    %938 = vmatprep.subr.mxu0 0.0
    %939 = vmatpush1.msra.mxu0 %v802
    %940 = vmatprep.subr.mxu0 0.0
    %941 = vmatpush1.msra.mxu0 %v803
    %942 = vmatprep.subr.mxu0 0.0
    %943 = vmatpush1.msra.mxu0 %v804
    %944 = vmatprep.mubr.f32.mxu0 %v736
    %945 = vmatmul.mubr.f32.gmra.mrb[0].mxu0 %v735
    %v946 = vpop.f32.mrb[0].mxu0
    %v947 = vadd.f32 %v872, %v946
    %v948 = vpop.f32.mrb[0].mxu0
    %949 = vmatprep.mubr.f32.mxu0 %v740
    %950 = vmatmul.mubr.f32.gmra.mrb[0].mxu0 %v739
    %v951 = vpop.f32.mrb[0].mxu0
    %v952 = vadd.f32 %v877, %v951
    %v953 = vpop.f32.mrb[0].mxu0
    %954 = vdwg.mxu0
    %vm955 = vcmask 7168
    %956 = vst.msk [vmem:[%s21] sm:$0xff] %vm955, %v696
    %957 = vst.msk [vmem:[%s21 + $0x8] sm:$0xff] %vm955, %v716
    %v958 = vsub.f32 %v947, %v400
    %v959 = vsub.f32 %v952, %v401
    %v960 = vmul.f32 %v958, %v958
    %v961 = vmul.f32 %v959, %v959
    %v962 = vsel %vm389, %v960, 0.0
    %v963 = vsel %vm389, %v961, 0.0
    %v964 = vadd.f32 %v962, %v963
    %965 = vadd.xlane.f32.xlu0 %v964
    %v966 = vpop.xlane.xlu0 %965
    %v967 = vrot.slane %v966, 4
    %v968 = vadd.f32 %v966, %v967
    %v969 = vrot.slane %v968, 2
    %v970 = vadd.f32 %v968, %v969
    %v971 = vrot.slane %v970, 1
    %v972 = vadd.f32 %v970, %v971
    %s973 = vtos %v972
    %v974 = vstv %s973
    %vm975 = vcmask 0
    %976 = vst.msk [vmem:[#allocation2] sm:$0x1] %vm975, %v974
    %v977 = vld [vmem:[%s11] sm:$0xff]
    %v978 = vld [vmem:[%s11 + $0x8] sm:$0xff]
    %v979 = vld [vmem:[%s11 + $0x10] sm:$0xff]
    %v980 = vld [vmem:[%s11 + $0x18] sm:$0xff]
    %v981 = vld [vmem:[%s12] sm:$0x1]
    %v983 = vlaneseq
    %v984 = vshrl.u32 %v983, 7
    %v985 = vsub.s32 0, %v984
    %v986 = vrot.slane %v981, %v985
    %v989 = vsel %vm389, %v947, 0
    %v992 = vsel %vm389, %v952, 0
    %994 = vmatprep.subr.mxu0 0.0
    %995 = vmatpush1.msra.mxu0 %v977
    %996 = vmatprep.subr.mxu0 0.0
    %997 = vmatpush1.msra.mxu0 %v978
    %998 = vmatprep.subr.mxu0 0.0
    %999 = vmatpush1.msra.mxu0 %v979
    %1000 = vmatprep.subr.mxu0 0.0
    %1001 = vmatpush1.msra.mxu0 %v980
    %1002 = vmatprep.subr.mxu0 0.0
    %1003 = vmatpush1.msra.mxu0 0.0
    %1004 = vmatprep.subr.mxu0 0.0
    %1005 = vmatpush1.msra.mxu0 0.0
    %1006 = vmatprep.subr.mxu0 0.0
    %1007 = vmatpush1.msra.mxu0 0.0
    %1008 = vmatprep.subr.mxu0 0.0
    %1009 = vmatpush1.msra.mxu0 0.0
    %1010 = vmatprep.subr.mxu0 0.0
    %1011 = vmatpush1.msra.mxu0 0.0
    %1012 = vmatprep.subr.mxu0 0.0
    %1013 = vmatpush1.msra.mxu0 0.0
    %1014 = vmatprep.subr.mxu0 0.0
    %1015 = vmatpush1.msra.mxu0 0.0
    %1016 = vmatprep.subr.mxu0 0.0
    %1017 = vmatpush1.msra.mxu0 0.0
    %1018 = vmatprep.subr.mxu0 0.0
    %1019 = vmatpush1.msra.mxu0 0.0
    %1020 = vmatprep.subr.mxu0 0.0
    %1021 = vmatpush1.msra.mxu0 0.0
    %1022 = vmatprep.subr.mxu0 0.0
    %1023 = vmatpush1.msra.mxu0 0.0
    %1024 = vmatprep.subr.mxu0 0.0
    %1025 = vmatpush1.msra.mxu0 0.0
    %1026 = vmatprep.subr.mxu0 0.0
    %1027 = vmatpush1.msra.mxu0 0.0
    %1028 = vmatprep.subr.mxu0 0.0
    %1029 = vmatpush1.msra.mxu0 0.0
    %1030 = vmatprep.subr.mxu0 0.0
    %1031 = vmatpush1.msra.mxu0 0.0
    %1032 = vmatprep.subr.mxu0 0.0
    %1033 = vmatpush1.msra.mxu0 0.0
    %1034 = vmatprep.subr.mxu0 0.0
    %1035 = vmatpush1.msra.mxu0 0.0
    %1036 = vmatprep.subr.mxu0 0.0
    %1037 = vmatpush1.msra.mxu0 0.0
    %1038 = vmatprep.subr.mxu0 0.0
    %1039 = vmatpush1.msra.mxu0 0.0
    %1040 = vmatprep.subr.mxu0 0.0
    %1041 = vmatpush1.msra.mxu0 0.0
    %1042 = vmatprep.subr.mxu0 0.0
    %1043 = vmatpush1.msra.mxu0 0.0
    %1044 = vmatprep.subr.mxu0 0.0
    %1045 = vmatpush1.msra.mxu0 0.0
    %1046 = vmatprep.subr.mxu0 0.0
    %1047 = vmatpush1.msra.mxu0 0.0
    %1048 = vmatprep.subr.mxu0 0.0
    %1049 = vmatpush1.msra.mxu0 0.0
    %1050 = vmatprep.subr.mxu0 0.0
    %1051 = vmatpush1.msra.mxu0 0.0
    %1052 = vmatprep.subr.mxu0 0.0
    %1053 = vmatpush1.msra.mxu0 0.0
    %1054 = vmatprep.subr.mxu0 0.0
    %1055 = vmatpush1.msra.mxu0 0.0
    %1056 = vmatprep.subr.mxu0 0.0
    %1057 = vmatpush1.msra.mxu0 0.0
    %1058 = vmatprep.mubr.f32.mxu0 0.0
    %1059 = vmatmul.mubr.f32.gmra.mrb[0].mxu0 %v989
    %v1060 = vpop.f32.mrb[0].mxu0
    %v1061 = vadd.f32 %v986, %v1060
    %v1062 = vpop.f32.mrb[0].mxu0
    %1063 = vmatprep.mubr.f32.mxu0 0.0
    %1064 = vmatmul.mubr.f32.gmra.mrb[0].mxu0 %v992
    %v1065 = vpop.f32.mrb[0].mxu0
    %v1066 = vadd.f32 %v986, %v1065
    %v1067 = vpop.f32.mrb[0].mxu0
    %1068 = vdwg.mxu0
    %v1069 = vld [vmem:[%s13] sm:$0xff]
    %v1070 = vld [vmem:[%s13 + $0x8] sm:$0xff]
    %v1071 = vld [vmem:[%s13 + $0x10] sm:$0xff]
    %v1072 = vld [vmem:[%s13 + $0x18] sm:$0xff]
    %v1073 = vld [vmem:[%s13 + $0x20] sm:$0xff]
    %v1074 = vld [vmem:[%s13 + $0x28] sm:$0xff]
    %v1075 = vld [vmem:[%s14] sm:$0x1]
    %v1077 = vlaneseq
    %v1078 = vshrl.u32 %v1077, 7
    %v1079 = vsub.s32 0, %v1078
    %v1080 = vrot.slane %v1075, %v1079
    %vm1082 = vcmask 392192
    %v1084 = vsel %vm1082, %v1061, 0
    %v1087 = vsel %vm1082, %v1066, 0
    %1089 = vmatprep.subr.mxu0 0.0
    %1090 = vmatpush1.msra.mxu0 %v1069
    %1091 = vmatprep.subr.mxu0 0.0
    %1092 = vmatpush1.msra.mxu0 %v1070
    %1093 = vmatprep.subr.mxu0 0.0
    %1094 = vmatpush1.msra.mxu0 %v1071
    %1095 = vmatprep.subr.mxu0 0.0
    %1096 = vmatpush1.msra.mxu0 %v1072
    %1097 = vmatprep.subr.mxu0 0.0
    %1098 = vmatpush1.msra.mxu0 %v1073
    %1099 = vmatprep.subr.mxu0 0.0
    %1100 = vmatpush1.msra.mxu0 %v1074
    %1101 = vmatprep.subr.mxu0 0.0
    %1102 = vmatpush1.msra.mxu0 0.0
    %1103 = vmatprep.subr.mxu0 0.0
    %1104 = vmatpush1.msra.mxu0 0.0
    %1105 = vmatprep.subr.mxu0 0.0
    %1106 = vmatpush1.msra.mxu0 0.0
    %1107 = vmatprep.subr.mxu0 0.0
    %1108 = vmatpush1.msra.mxu0 0.0
    %1109 = vmatprep.subr.mxu0 0.0
    %1110 = vmatpush1.msra.mxu0 0.0
    %1111 = vmatprep.subr.mxu0 0.0
    %1112 = vmatpush1.msra.mxu0 0.0
    %1113 = vmatprep.subr.mxu0 0.0
    %1114 = vmatpush1.msra.mxu0 0.0
    %1115 = vmatprep.subr.mxu0 0.0
    %1116 = vmatpush1.msra.mxu0 0.0
    %1117 = vmatprep.subr.mxu0 0.0
    %1118 = vmatpush1.msra.mxu0 0.0
    %1119 = vmatprep.subr.mxu0 0.0
    %1120 = vmatpush1.msra.mxu0 0.0
    %1121 = vmatprep.subr.mxu0 0.0
    %1122 = vmatpush1.msra.mxu0 0.0
    %1123 = vmatprep.subr.mxu0 0.0
    %1124 = vmatpush1.msra.mxu0 0.0
    %1125 = vmatprep.subr.mxu0 0.0
    %1126 = vmatpush1.msra.mxu0 0.0
    %1127 = vmatprep.subr.mxu0 0.0
    %1128 = vmatpush1.msra.mxu0 0.0
    %1129 = vmatprep.subr.mxu0 0.0
    %1130 = vmatpush1.msra.mxu0 0.0
    %1131 = vmatprep.subr.mxu0 0.0
    %1132 = vmatpush1.msra.mxu0 0.0
    %1133 = vmatprep.subr.mxu0 0.0
    %1134 = vmatpush1.msra.mxu0 0.0
    %1135 = vmatprep.subr.mxu0 0.0
    %1136 = vmatpush1.msra.mxu0 0.0
    %1137 = vmatprep.subr.mxu0 0.0
    %1138 = vmatpush1.msra.mxu0 0.0
    %1139 = vmatprep.subr.mxu0 0.0
    %1140 = vmatpush1.msra.mxu0 0.0
    %1141 = vmatprep.subr.mxu0 0.0
    %1142 = vmatpush1.msra.mxu0 0.0
    %1143 = vmatprep.subr.mxu0 0.0
    %1144 = vmatpush1.msra.mxu0 0.0
    %1145 = vmatprep.subr.mxu0 0.0
    %1146 = vmatpush1.msra.mxu0 0.0
    %1147 = vmatprep.subr.mxu0 0.0
    %1148 = vmatpush1.msra.mxu0 0.0
    %1149 = vmatprep.subr.mxu0 0.0
    %1150 = vmatpush1.msra.mxu0 0.0
    %1151 = vmatprep.subr.mxu0 0.0
    %1152 = vmatpush1.msra.mxu0 0.0
    %1153 = vmatprep.mubr.f32.mxu0 0.0
    %1154 = vmatmul.mubr.f32.gmra.mrb[0].mxu0 %v1084
    %v1155 = vpop.f32.mrb[0].mxu0
    %v1156 = vadd.f32 %v1080, %v1155
    %v1157 = vpop.f32.mrb[0].mxu0
    %1158 = vmatprep.mubr.f32.mxu0 0.0
    %1159 = vmatmul.mubr.f32.gmra.mrb[0].mxu0 %v1087
    %v1160 = vpop.f32.mrb[0].mxu0
    %v1161 = vadd.f32 %v1080, %v1160
    %v1162 = vpop.f32.mrb[0].mxu0
    %1163 = vdwg.mxu0
    %v1164 = vtanh.pop %v1156
    %v1165 = vtanh.pop %v1161
    %v1166 = vld [vmem:[%s15] sm:$0xff]
    %v1167 = vld [vmem:[%s15 + $0x8] sm:$0xff]
    %v1168 = vld [vmem:[%s15 + $0x10] sm:$0xff]
    %v1169 = vld [vmem:[%s15 + $0x18] sm:$0xff]
    %v1170 = vld [vmem:[%s15 + $0x20] sm:$0xff]
    %v1171 = vld [vmem:[%s15 + $0x28] sm:$0xff]
    %v1172 = vld [vmem:[%s15 + $0x30] sm:$0xff]
    %v1173 = vld [vmem:[%s15 + $0x38] sm:$0xff]
    %v1174 = vld [vmem:[%s15 + $0x40] sm:$0xff]
    %v1175 = vld [vmem:[%s15 + $0x48] sm:$0xff]
    %v1176 = vld [vmem:[%s15 + $0x50] sm:$0xff]
    %v1177 = vld [vmem:[%s15 + $0x58] sm:$0xff]
    %v1178 = vld [vmem:[%s16] sm:$0x3]
    %v1180 = vlaneseq
    %v1181 = vshrl.u32 %v1180, 7
    %v1182 = vsub.s32 0, %v1181
    %v1183 = vrot.slane %v1178, %v1182
    %v1184 = vlaneseq
    %v1185 = vshrl.u32 %v1184, 7
    %v1186 = vsub.s32 1, %v1185
    %v1187 = vrot.slane %v1178, %v1186
    %v1191 = vsel %vm1082, %v1164, 0
    %v1194 = vsel %vm1082, %v1165, 0
    %1196 = vmatprep.subr.mxu0 %v1167
    %1197 = vmatpush1.msra.mxu0 %v1166
    %1198 = vmatprep.subr.mxu0 %v1169
    %1199 = vmatpush1.msra.mxu0 %v1168
    %1200 = vmatprep.subr.mxu0 %v1171
    %1201 = vmatpush1.msra.mxu0 %v1170
    %1202 = vmatprep.subr.mxu0 %v1173
    %1203 = vmatpush1.msra.mxu0 %v1172
    %1204 = vmatprep.subr.mxu0 %v1175
    %1205 = vmatpush1.msra.mxu0 %v1174
    %1206 = vmatprep.subr.mxu0 %v1177
    %1207 = vmatpush1.msra.mxu0 %v1176
    %1208 = vmatprep.subr.mxu0 0.0
    %1209 = vmatpush1.msra.mxu0 0.0
    %1210 = vmatprep.subr.mxu0 0.0
    %1211 = vmatpush1.msra.mxu0 0.0
    %1212 = vmatprep.subr.mxu0 0.0
    %1213 = vmatpush1.msra.mxu0 0.0
    %1214 = vmatprep.subr.mxu0 0.0
    %1215 = vmatpush1.msra.mxu0 0.0
    %1216 = vmatprep.subr.mxu0 0.0
    %1217 = vmatpush1.msra.mxu0 0.0
    %1218 = vmatprep.subr.mxu0 0.0
    %1219 = vmatpush1.msra.mxu0 0.0
    %1220 = vmatprep.subr.mxu0 0.0
    %1221 = vmatpush1.msra.mxu0 0.0
    %1222 = vmatprep.subr.mxu0 0.0
    %1223 = vmatpush1.msra.mxu0 0.0
    %1224 = vmatprep.subr.mxu0 0.0
    %1225 = vmatpush1.msra.mxu0 0.0
    %1226 = vmatprep.subr.mxu0 0.0
    %1227 = vmatpush1.msra.mxu0 0.0
    %1228 = vmatprep.subr.mxu0 0.0
    %1229 = vmatpush1.msra.mxu0 0.0
    %1230 = vmatprep.subr.mxu0 0.0
    %1231 = vmatpush1.msra.mxu0 0.0
    %1232 = vmatprep.subr.mxu0 0.0
    %1233 = vmatpush1.msra.mxu0 0.0
    %1234 = vmatprep.subr.mxu0 0.0
    %1235 = vmatpush1.msra.mxu0 0.0
    %1236 = vmatprep.subr.mxu0 0.0
    %1237 = vmatpush1.msra.mxu0 0.0
    %1238 = vmatprep.subr.mxu0 0.0
    %1239 = vmatpush1.msra.mxu0 0.0
    %1240 = vmatprep.subr.mxu0 0.0
    %1241 = vmatpush1.msra.mxu0 0.0
    %1242 = vmatprep.subr.mxu0 0.0
    %1243 = vmatpush1.msra.mxu0 0.0
    %1244 = vmatprep.subr.mxu0 0.0
    %1245 = vmatpush1.msra.mxu0 0.0
    %1246 = vmatprep.subr.mxu0 0.0
    %1247 = vmatpush1.msra.mxu0 0.0
    %1248 = vmatprep.subr.mxu0 0.0
    %1249 = vmatpush1.msra.mxu0 0.0
    %1250 = vmatprep.subr.mxu0 0.0
    %1251 = vmatpush1.msra.mxu0 0.0
    %1252 = vmatprep.subr.mxu0 0.0
    %1253 = vmatpush1.msra.mxu0 0.0
    %1254 = vmatprep.subr.mxu0 0.0
    %1255 = vmatpush1.msra.mxu0 0.0
    %1256 = vmatprep.subr.mxu0 0.0
    %1257 = vmatpush1.msra.mxu0 0.0
    %1258 = vmatprep.subr.mxu0 0.0
    %1259 = vmatpush1.msra.mxu0 0.0
    %1260 = vmatprep.mubr.f32.mxu0 0.0
    %1261 = vmatmul.mubr.f32.gmra.mrb[0].mxu0 %v1191
    %v1262 = vpop.f32.mrb[0].mxu0
    %v1263 = vadd.f32 %v1183, %v1262
    %v1264 = vpop.f32.mrb[0].mxu0
    %v1265 = vadd.f32 %v1187, %v1264
    %1266 = vmatprep.mubr.f32.mxu0 0.0
    %1267 = vmatmul.mubr.f32.gmra.mrb[0].mxu0 %v1194
    %v1268 = vpop.f32.mrb[0].mxu0
    %v1269 = vadd.f32 %v1183, %v1268
    %v1270 = vpop.f32.mrb[0].mxu0
    %v1271 = vadd.f32 %v1187, %v1270
    %1272 = vdwg.mxu0
    %v1273 = vld [vmem:[%s17] sm:$0xff]
    %v1274 = vld [vmem:[%s17 + $0x8] sm:$0xff]
    %v1275 = vld [vmem:[%s17 + $0x10] sm:$0xff]
    %v1276 = vld [vmem:[%s17 + $0x18] sm:$0xff]
    %v1277 = vld [vmem:[%s17 + $0x20] sm:$0xff]
    %v1278 = vld [vmem:[%s17 + $0x28] sm:$0xff]
    %v1279 = vld [vmem:[%s18] sm:$0x1]
    %v1281 = vlaneseq
    %v1282 = vshrl.u32 %v1281, 7
    %v1283 = vsub.s32 0, %v1282
    %v1284 = vrot.slane %v1279, %v1283
    %1286 = vmatprep.subr.mxu0 0.0
    %1287 = vmatpush1.msra.mxu0 %v1273
    %1288 = vmatprep.subr.mxu0 0.0
    %1289 = vmatpush1.msra.mxu0 %v1274
    %1290 = vmatprep.subr.mxu0 0.0
    %1291 = vmatpush1.msra.mxu0 %v1275
    %1292 = vmatprep.subr.mxu0 0.0
    %1293 = vmatpush1.msra.mxu0 %v1276
    %1294 = vmatprep.subr.mxu0 0.0
    %1295 = vmatpush1.msra.mxu0 %v1277
    %1296 = vmatprep.subr.mxu0 0.0
    %1297 = vmatpush1.msra.mxu0 %v1278
    %1298 = vmatprep.subr.mxu0 0.0
    %1299 = vmatpush1.msra.mxu0 0.0
    %1300 = vmatprep.subr.mxu0 0.0
    %1301 = vmatpush1.msra.mxu0 0.0
    %1302 = vmatprep.subr.mxu0 0.0
    %1303 = vmatpush1.msra.mxu0 0.0
    %1304 = vmatprep.subr.mxu0 0.0
    %1305 = vmatpush1.msra.mxu0 0.0
    %1306 = vmatprep.subr.mxu0 0.0
    %1307 = vmatpush1.msra.mxu0 0.0
    %1308 = vmatprep.subr.mxu0 0.0
    %1309 = vmatpush1.msra.mxu0 0.0
    %1310 = vmatprep.subr.mxu0 0.0
    %1311 = vmatpush1.msra.mxu0 0.0
    %1312 = vmatprep.subr.mxu0 0.0
    %1313 = vmatpush1.msra.mxu0 0.0
    %1314 = vmatprep.subr.mxu0 0.0
    %1315 = vmatpush1.msra.mxu0 0.0
    %1316 = vmatprep.subr.mxu0 0.0
    %1317 = vmatpush1.msra.mxu0 0.0
    %1318 = vmatprep.subr.mxu0 0.0
    %1319 = vmatpush1.msra.mxu0 0.0
    %1320 = vmatprep.subr.mxu0 0.0
    %1321 = vmatpush1.msra.mxu0 0.0
    %1322 = vmatprep.subr.mxu0 0.0
    %1323 = vmatpush1.msra.mxu0 0.0
    %1324 = vmatprep.subr.mxu0 0.0
    %1325 = vmatpush1.msra.mxu0 0.0
    %1326 = vmatprep.subr.mxu0 0.0
    %1327 = vmatpush1.msra.mxu0 0.0
    %1328 = vmatprep.subr.mxu0 0.0
    %1329 = vmatpush1.msra.mxu0 0.0
    %1330 = vmatprep.subr.mxu0 0.0
    %1331 = vmatpush1.msra.mxu0 0.0
    %1332 = vmatprep.subr.mxu0 0.0
    %1333 = vmatpush1.msra.mxu0 0.0
    %1334 = vmatprep.subr.mxu0 0.0
    %1335 = vmatpush1.msra.mxu0 0.0
    %1336 = vmatprep.subr.mxu0 0.0
    %1337 = vmatpush1.msra.mxu0 0.0
    %1338 = vmatprep.subr.mxu0 0.0
    %1339 = vmatpush1.msra.mxu0 0.0
    %1340 = vmatprep.subr.mxu0 0.0
    %1341 = vmatpush1.msra.mxu0 0.0
    %1342 = vmatprep.subr.mxu0 0.0
    %1343 = vmatpush1.msra.mxu0 0.0
    %1344 = vmatprep.subr.mxu0 0.0
    %1345 = vmatpush1.msra.mxu0 0.0
    %1346 = vmatprep.subr.mxu0 0.0
    %1347 = vmatpush1.msra.mxu0 0.0
    %1348 = vmatprep.subr.mxu0 0.0
    %1349 = vmatpush1.msra.mxu0 0.0
    %1350 = vmatprep.mubr.f32.mxu0 0.0
    %1351 = vmatmul.mubr.f32.gmra.mrb[0].mxu0 %v1084
    %v1352 = vpop.f32.mrb[0].mxu0
    %v1353 = vadd.f32 %v1284, %v1352
    %v1354 = vpop.f32.mrb[0].mxu0
    %1355 = vmatprep.mubr.f32.mxu0 0.0
    %1356 = vmatmul.mubr.f32.gmra.mrb[0].mxu0 %v1087
    %v1357 = vpop.f32.mrb[0].mxu0
    %v1358 = vadd.f32 %v1284, %v1357
    %v1359 = vpop.f32.mrb[0].mxu0
    %1360 = vdwg.mxu0
    %v1361 = vtanh.pop %v1353
    %v1362 = vtanh.pop %v1358
    %v1363 = vld [vmem:[%s19] sm:$0xff]
    %v1364 = vld [vmem:[%s19 + $0x8] sm:$0xff]
    %v1365 = vld [vmem:[%s19 + $0x10] sm:$0xff]
    %v1366 = vld [vmem:[%s19 + $0x18] sm:$0xff]
    %v1367 = vld [vmem:[%s19 + $0x20] sm:$0xff]
    %v1368 = vld [vmem:[%s19 + $0x28] sm:$0xff]
    %v1369 = vld [vmem:[%s19 + $0x30] sm:$0xff]
    %v1370 = vld [vmem:[%s19 + $0x38] sm:$0xff]
    %v1371 = vld [vmem:[%s19 + $0x40] sm:$0xff]
    %v1372 = vld [vmem:[%s19 + $0x48] sm:$0xff]
    %v1373 = vld [vmem:[%s19 + $0x50] sm:$0xff]
    %v1374 = vld [vmem:[%s19 + $0x58] sm:$0xff]
    %v1375 = vld [vmem:[%s20] sm:$0x3]
    %v1377 = vlaneseq
    %v1378 = vshrl.u32 %v1377, 7
    %v1379 = vsub.s32 0, %v1378
    %v1380 = vrot.slane %v1375, %v1379
    %v1381 = vlaneseq
    %v1382 = vshrl.u32 %v1381, 7
    %v1383 = vsub.s32 1, %v1382
    %v1384 = vrot.slane %v1375, %v1383
    %v1388 = vsel %vm1082, %v1361, 0
    %v1391 = vsel %vm1082, %v1362, 0
    %1393 = vmatprep.subr.mxu0 %v1364
    %1394 = vmatpush1.msra.mxu0 %v1363
    %1395 = vmatprep.subr.mxu0 %v1366
    %1396 = vmatpush1.msra.mxu0 %v1365
    %1397 = vmatprep.subr.mxu0 %v1368
    %1398 = vmatpush1.msra.mxu0 %v1367
    %1399 = vmatprep.subr.mxu0 %v1370
    %1400 = vmatpush1.msra.mxu0 %v1369
    %1401 = vmatprep.subr.mxu0 %v1372
    %1402 = vmatpush1.msra.mxu0 %v1371
    %1403 = vmatprep.subr.mxu0 %v1374
    %1404 = vmatpush1.msra.mxu0 %v1373
    %1405 = vmatprep.subr.mxu0 0.0
    %1406 = vmatpush1.msra.mxu0 0.0
    %1407 = vmatprep.subr.mxu0 0.0
    %1408 = vmatpush1.msra.mxu0 0.0
    %1409 = vmatprep.subr.mxu0 0.0
    %1410 = vmatpush1.msra.mxu0 0.0
    %1411 = vmatprep.subr.mxu0 0.0
    %1412 = vmatpush1.msra.mxu0 0.0
    %1413 = vmatprep.subr.mxu0 0.0
    %1414 = vmatpush1.msra.mxu0 0.0
    %1415 = vmatprep.subr.mxu0 0.0
    %1416 = vmatpush1.msra.mxu0 0.0
    %1417 = vmatprep.subr.mxu0 0.0
    %1418 = vmatpush1.msra.mxu0 0.0
    %1419 = vmatprep.subr.mxu0 0.0
    %1420 = vmatpush1.msra.mxu0 0.0
    %1421 = vmatprep.subr.mxu0 0.0
    %1422 = vmatpush1.msra.mxu0 0.0
    %1423 = vmatprep.subr.mxu0 0.0
    %1424 = vmatpush1.msra.mxu0 0.0
    %1425 = vmatprep.subr.mxu0 0.0
    %1426 = vmatpush1.msra.mxu0 0.0
    %1427 = vmatprep.subr.mxu0 0.0
    %1428 = vmatpush1.msra.mxu0 0.0
    %1429 = vmatprep.subr.mxu0 0.0
    %1430 = vmatpush1.msra.mxu0 0.0
    %1431 = vmatprep.subr.mxu0 0.0
    %1432 = vmatpush1.msra.mxu0 0.0
    %1433 = vmatprep.subr.mxu0 0.0
    %1434 = vmatpush1.msra.mxu0 0.0
    %1435 = vmatprep.subr.mxu0 0.0
    %1436 = vmatpush1.msra.mxu0 0.0
    %1437 = vmatprep.subr.mxu0 0.0
    %1438 = vmatpush1.msra.mxu0 0.0
    %1439 = vmatprep.subr.mxu0 0.0
    %1440 = vmatpush1.msra.mxu0 0.0
    %1441 = vmatprep.subr.mxu0 0.0
    %1442 = vmatpush1.msra.mxu0 0.0
    %1443 = vmatprep.subr.mxu0 0.0
    %1444 = vmatpush1.msra.mxu0 0.0
    %1445 = vmatprep.subr.mxu0 0.0
    %1446 = vmatpush1.msra.mxu0 0.0
    %1447 = vmatprep.subr.mxu0 0.0
    %1448 = vmatpush1.msra.mxu0 0.0
    %1449 = vmatprep.subr.mxu0 0.0
    %1450 = vmatpush1.msra.mxu0 0.0
    %1451 = vmatprep.subr.mxu0 0.0
    %1452 = vmatpush1.msra.mxu0 0.0
    %1453 = vmatprep.subr.mxu0 0.0
    %1454 = vmatpush1.msra.mxu0 0.0
    %1455 = vmatprep.subr.mxu0 0.0
    %1456 = vmatpush1.msra.mxu0 0.0
    %1457 = vmatprep.mubr.f32.mxu0 0.0
    %1458 = vmatmul.mubr.f32.gmra.mrb[0].mxu0 %v1388
    %v1459 = vpop.f32.mrb[0].mxu0
    %v1460 = vadd.f32 %v1380, %v1459
    %v1461 = vpop.f32.mrb[0].mxu0
    %v1462 = vadd.f32 %v1384, %v1461
    %1463 = vmatprep.mubr.f32.mxu0 0.0
    %1464 = vmatmul.mubr.f32.gmra.mrb[0].mxu0 %v1391
    %v1465 = vpop.f32.mrb[0].mxu0
    %v1466 = vadd.f32 %v1380, %v1465
    %v1467 = vpop.f32.mrb[0].mxu0
    %v1468 = vadd.f32 %v1384, %v1467
    %1469 = vdwg.mxu0
    %v1470 = vld [vmem:[%s1] sm:$0xff]
    %v1471 = vld [vmem:[%s1 + $0x8] sm:$0xff]
    %v1472 = vld [vmem:[%s1 + $0x10] sm:$0xff]
    %v1473 = vld [vmem:[%s1 + $0x18] sm:$0xff]
    %v1474 = vsub.f32 %v1263, %v1470
    %v1475 = vsub.f32 %v1265, %v1471
    %v1476 = vsub.f32 %v1269, %v1472
    %v1477 = vsub.f32 %v1271, %v1473
    %v1478 = vmul.f32 %v1474, %v1474
    %v1479 = vmul.f32 %v1475, %v1475
    %v1480 = vmul.f32 %v1476, %v1476
    %v1481 = vmul.f32 %v1477, %v1477
    %v1482 = vsel %vm110, %v1479, 0.0
    %v1483 = vadd.f32 %v1478, %v1482
    %v1484 = vadd.f32 %v1483, %v1480
    %v1485 = vsel %vm110, %v1481, 0.0
    %v1486 = vadd.f32 %v1484, %v1485
    %1487 = vadd.xlane.f32.xlu0 %v1486
    %v1488 = vpop.xlane.xlu0 %1487
    %v1489 = vrot.slane %v1488, 4
    %v1490 = vadd.f32 %v1488, %v1489
    %v1491 = vrot.slane %v1490, 2
    %v1492 = vadd.f32 %v1490, %v1491
    %v1493 = vrot.slane %v1492, 1
    %v1494 = vadd.f32 %v1492, %v1493
    %s1495 = vtos %v1494
    %v1496 = vstv %s1495
    %1497 = vst.msk [vmem:[#allocation4] sm:$0x1] %vm975, %v1496
    %v1498 = vld [vmem:[%s2] sm:$0xff]
    %v1499 = vld [vmem:[%s2 + $0x8] sm:$0xff]
    %v1500 = vld [vmem:[%s2 + $0x10] sm:$0xff]
    %v1501 = vld [vmem:[%s2 + $0x18] sm:$0xff]
    %v1502 = vsub.f32 %v1460, %v1498
    %v1503 = vsub.f32 %v1462, %v1499
    %v1504 = vsub.f32 %v1466, %v1500
    %v1505 = vsub.f32 %v1468, %v1501
    %v1506 = vmul.f32 %v1502, %v1502
    %v1507 = vmul.f32 %v1503, %v1503
    %v1508 = vmul.f32 %v1504, %v1504
    %v1509 = vmul.f32 %v1505, %v1505
    %v1510 = vsel %vm110, %v1507, 0.0
    %v1511 = vadd.f32 %v1506, %v1510
    %v1512 = vadd.f32 %v1511, %v1508
    %v1513 = vsel %vm110, %v1509, 0.0
    %v1514 = vadd.f32 %v1512, %v1513
    %1515 = vadd.xlane.f32.xlu0 %v1514
    %v1516 = vpop.xlane.xlu0 %1515
    %v1517 = vrot.slane %v1516, 4
    %v1518 = vadd.f32 %v1516, %v1517
    %v1519 = vrot.slane %v1518, 2
    %v1520 = vadd.f32 %v1518, %v1519
    %v1521 = vrot.slane %v1520, 1
    %v1522 = vadd.f32 %v1520, %v1521
    %s1523 = vtos %v1522
    %v1524 = vstv %s1523
    %1525 = vst.msk [vmem:[#allocation6] sm:$0x1] %vm975, %v1524
    // Predicated region
    $region86: #{vqnsp_forward.1} parent=1 // pred_check
      _
    $region87: #{vqnsp_forward.1} parent=1 // pred_check_branch
      %1527 = sbr.rel (0) target = $region89
    $region88: #{vqnsp_forward.1} parent=1 // pred_region
      _
    $region89: #{vqnsp_forward.1} parent=1 // pred_fallthru
      _
    // Predicated region
    $region90: #{vqnsp_forward.1} parent=1 // pred_check
      _
    $region91: #{vqnsp_forward.1} parent=1 // pred_check_branch
      %1529 = sbr.rel (0) target = $region93
    $region92: #{vqnsp_forward.1} parent=1 // pred_region
      %s1531 = ssub.s32 16, 16
      %1532 = vsyncadd [#allocation3], %s1531
      %s1534 = sshll.u32 [#allocation2], 4
      %s1535 = int_to_ptr.vmem [resolvable:$true] %s1534
      %1537 = dma.vmem_to_hbm [thread:$0]  %s1535, 16, %s22, [#allocation3]
    $region93: #{vqnsp_forward.1} parent=1 // pred_fallthru
      _
    // Predicated region
    $region94: #{vqnsp_forward.1} parent=1 // pred_check
      _
    $region95: #{vqnsp_forward.1} parent=1 // pred_check_branch
      %1539 = sbr.rel (0) target = $region97
    $region96: #{vqnsp_forward.1} parent=1 // pred_region
      %s1541 = ssub.s32 16, 16
      %1542 = vsyncadd [#allocation5], %s1541
      %s1544 = sshll.u32 [#allocation4], 4
      %s1545 = int_to_ptr.vmem [resolvable:$true] %s1544
      %1547 = dma.vmem_to_hbm [thread:$0]  %s1545, 16, %s23, [#allocation5]
    $region97: #{vqnsp_forward.1} parent=1 // pred_fallthru
      _
    // Predicated region
    $region98: #{vqnsp_forward.1} parent=1 // pred_check
      _
    $region99: #{vqnsp_forward.1} parent=1 // pred_check_branch
      %1549 = sbr.rel (0) target = $region101
    $region100: #{vqnsp_forward.1} parent=1 // pred_region
      %s1551 = ssub.s32 16, 16
      %1552 = vsyncadd [#allocation5], %s1551
      %s1554 = sshll.u32 [#allocation6], 4
      %s1555 = int_to_ptr.vmem [resolvable:$true] %s1554
      %1557 = dma.vmem_to_hbm [thread:$0]  %s1555, 16, %s24, [#allocation5]
    $region101: #{vqnsp_forward.1} parent=1 // pred_fallthru
      _
    // Predicated region
    $region102: #{vqnsp_forward.1} parent=1 // pred_check
      _
    $region103: #{vqnsp_forward.1} parent=1 // pred_check_branch
      %1559 = sbr.rel (0) target = $region105
    $region104: #{vqnsp_forward.1} parent=1 // pred_region
      _
    $region105: #{vqnsp_forward.1} parent=1 // pred_fallthru
      _
    // Predicated region
    $region106: #{vqnsp_forward.1} parent=1 // pred_check
      _
    $region107: #{vqnsp_forward.1} parent=1 // pred_check_branch
      %1561 = sbr.rel (0) target = $region109
    $region108: #{vqnsp_forward.1} parent=1 // pred_region
      %1562 = dma.done [#allocation3], 16
    $region109: #{vqnsp_forward.1} parent=1 // pred_fallthru
      _
    // Predicated region
    $region110: #{vqnsp_forward.1} parent=1 // pred_check
      _
    $region111: #{vqnsp_forward.1} parent=1 // pred_check_branch
      %1564 = sbr.rel (0) target = $region113
    $region112: #{vqnsp_forward.1} parent=1 // pred_region
      %1565 = dma.done [#allocation5], 16
    $region113: #{vqnsp_forward.1} parent=1 // pred_fallthru
      _
    // Predicated region
    $region114: #{vqnsp_forward.1} parent=1 // pred_check
      _
    $region115: #{vqnsp_forward.1} parent=1 // pred_check_branch
      %1567 = sbr.rel (0) target = $region117
    $region116: #{vqnsp_forward.1} parent=1 // pred_region
      %1568 = dma.done [#allocation5], 16
    $region117: #{vqnsp_forward.1} parent=1 // pred_fallthru
      _
    %1569 = vsyncpa [#allocation3], 1
    %1570 = vsyncpa [#allocation5], 1

</llo_original>
